<compile_context>
chip_gen: v5e
topology: v5e:2x2
jax: 0.10.0
libtpu: 0.0.40
codegen_flags: <defaults>
</compile_context>

<pallas_src>
import functools

import jax
import jax.numpy as jnp
from jax.experimental import pallas as pl
from jax.experimental.pallas import tpu as pltpu


def _sigmoid(x):
    # EUP approx reciprocal instead of jax.nn.sigmoid's VPU divide.
    return pl.reciprocal(1.0 + jnp.exp(-x), approx=True)


def _silu(x):
    return x * _sigmoid(x)


def mbconv_kernel(x_ref, w_exp_ref, bn1_b_ref, w_dwm_ref, bn2_b_ref,
                  w_se1_ref, b_se1_ref, w_se2_ref, b_se2_ref,
                  w_proj_ref, bn3_b_ref, out_ref, *, K, H, W, n_img, skip):
    HW = H * W
    N = n_img * HW
    x = x_ref[...]                                     # (Cin, N) f32

    # --- expand: 1x1 conv (BN scale pre-folded into w_exp rows) -> +bias -> SiLU ---
    h = jnp.dot(w_exp_ref[...], x.astype(w_exp_ref.dtype),
                preferred_element_type=jnp.float32)    # (Cm, N), f32 accumulate
    h = _silu(h + bn1_b_ref[...])

    # --- depthwise KxK conv, stride 1, SAME padding, groups=Cm (no bias) ---
    # A spatial shift (di, dj) is a lane roll by di*W + dj in the flattened
    # lane axis; boundary masks AND the bn2 scale are pre-folded into the
    # per-tap weights w_dwm[t] (Cm, N), so each tap is one mul + one add.
    # Rolls crossing an image boundary are out-of-image taps -> already zeroed.
    P = K // 2
    center = P * K + P
    acc = w_dwm_ref[center] * h                        # init from center tap
    for i in range(K):                                 # static K*K tap unroll
        for j in range(K):
            di, dj = i - P, j - P
            if di == 0 and dj == 0:
                continue
            shift = (-(di * W + dj)) % N               # src[:, n] == h[:, n + di*W + dj]
            acc = acc + w_dwm_ref[i * K + j] * pltpu.roll(h, shift, axis=1)

    # --- BN (scale folded into taps) bias -> SiLU ---
    h2 = _silu(acc + bn2_b_ref[...])                   # (Cm, N)

    # --- squeeze-and-excite, per image (tiny: VPU/XLU only, keep it off the MXU) ---
    chunks = []
    for im in range(n_img):                            # static, 128-aligned lane slices
        c = h2[:, im * HW:(im + 1) * HW]               # (Cm, HW)
        pooled = jnp.mean(c, axis=1, keepdims=True)                  # (Cm, 1)
        s1 = jnp.sum(w_se1_ref[...] * pooled, axis=0, keepdims=True) # (1, se)
        s1 = _silu(s1 + b_se1_ref[...])
        s2 = jnp.sum(w_se2_ref[...] * s1, axis=1, keepdims=True)     # (Cm, 1)
        s2 = _sigmoid(s2 + b_se2_ref[...])
        chunks.append(c * s2)                          # lane broadcast
    h2 = jnp.concatenate(chunks, axis=1) if n_img > 1 else chunks[0]

    # --- project: 1x1 conv (BN scale pre-folded into w_proj rows) -> +bias ---
    o = jnp.dot(w_proj_ref[...], h2.astype(w_proj_ref.dtype),
                preferred_element_type=jnp.float32)    # (Cout, N)
    o = o + bn3_b_ref[...]

    # --- skip connection (stride==1, Cin==Cout; DropPath p=0 is identity) ---
    if skip:
        o = o + x

    out_ref[...] = o.astype(out_ref.dtype)


def _full_spec(a):
    nd = a.ndim
    return pl.BlockSpec(a.shape, lambda b, _nd=nd: (0,) * _nd)


def mbconv_forward(x_nchw, kp, *, kernel_size, skip):
    """x_nchw: (B, Cin, H, W) float32 (PyTorch layout). Returns (B, Cout, H, W)."""
    B, Cin, H, W = x_nchw.shape
    HW = H * W
    Cout = kp["w_proj"].shape[0]
    N = kp["w_dwm"].shape[-1]            # images_per_block * HW (baked into the taps)
    n_img = N // HW
    assert B % n_img == 0, "batch must be divisible by images_per_block"

    # Layout plumbing only: channels -> sublanes, (batch*H*W) -> lanes.
    x = jnp.transpose(x_nchw, (1, 0, 2, 3)).reshape(Cin, B * HW)

    args = (x, kp["w_exp"], kp["bn1_b"], kp["w_dwm"], kp["bn2_b"],
            kp["w_se1"], kp["b_se1"], kp["w_se2"], kp["b_se2"],
            kp["w_proj"], kp["bn3_b"])

    in_specs = [pl.BlockSpec((Cin, N), lambda b: (0, b))]
    in_specs += [_full_spec(a) for a in args[1:]]       # weights: resident, constant maps
    out_specs = pl.BlockSpec((Cout, N), lambda b: (0, b))

    out = pl.pallas_call(
        functools.partial(mbconv_kernel, K=kernel_size, H=H, W=W,
                          n_img=n_img, skip=skip),
        out_shape=jax.ShapeDtypeStruct((Cout, B * HW), jnp.float32),
        grid=(B // n_img,),
        in_specs=in_specs,
        out_specs=out_specs,
        compiler_params=pltpu.CompilerParams(dimension_semantics=("parallel",)),
    )(*args)
    return jnp.transpose(out.reshape(Cout, B, H, W), (1, 0, 2, 3))


def prepare_kernel_params(raw, *, H, W, images_per_block, matmul_dtype=jnp.bfloat16):
    """Fold BN scales into the conv weights, pre-fold the depthwise SAME-padding
    boundary masks (and bn2 scale) into per-tap weights, and lay everything out
    for the channels-on-sublane / (batch*spatial)-on-lane kernel."""
    Cm = raw["w_exp"].shape[1]
    K = raw["w_dw"].shape[0]
    P = K // 2
    HW = H * W
    N = images_per_block * HW

    lane = jnp.arange(N)
    col = lane % W
    row = (lane // W) % H                 # row/col within each folded image

    kp = {}
    kp["w_exp"] = (raw["w_exp"].T * raw["bn1_s"].T).astype(matmul_dtype)   # (Cm, Cin)
    kp["bn1_b"] = raw["bn1_b"].T.astype(jnp.float32)                       # (Cm, 1)

    taps = []
    for i in range(K):
        for j in range(K):
            di, dj = i - P, j - P
            m = ((row + di >= 0) & (row + di < H) &
                 (col + dj >= 0) & (col + dj < W)).astype(jnp.float32)     # (N,)
            w = raw["w_dw"][i, j] * raw["bn2_s"][0]                        # (Cm,): bn2 scale folded
            taps.append(w[:, None] * m[None, :])                          # (Cm, N)
    kp["w_dwm"] = jnp.stack(taps, axis=0).astype(jnp.float32)              # (K*K, Cm, N)

    kp["bn2_b"] = raw["bn2_b"].T.astype(jnp.float32)                       # (Cm, 1)
    kp["w_se1"] = raw["w_se1"].astype(jnp.float32)                         # (Cm, se)
    kp["b_se1"] = raw["b_se1"].astype(jnp.float32)                         # (1, se)
    kp["w_se2"] = raw["w_se2"].T.astype(jnp.float32)                       # (Cm, se)
    kp["b_se2"] = raw["b_se2"].T.astype(jnp.float32)                       # (Cm, 1)
    kp["w_proj"] = (raw["w_proj"].T * raw["bn3_s"].T).astype(matmul_dtype) # (Cout, Cm)
    kp["bn3_b"] = raw["bn3_b"].T.astype(jnp.float32)                       # (Cout, 1)
    return kp


def mbconv_reference(x_nchw, p, *, K, skip):
    """Pure-JAX f32 reference matching the PyTorch module (inference-mode BN)."""
    B, Cin, H, W = x_nchw.shape
    x = jnp.transpose(x_nchw, (0, 2, 3, 1)).reshape(B, H * W, Cin)
    h = x @ p["w_exp"]
    h = h * p["bn1_s"] + p["bn1_b"]
    h = h * jax.nn.sigmoid(h)
    Cm = h.shape[-1]
    P = K // 2
    h4 = h.reshape(B, H, W, Cm)
    hp = jnp.pad(h4, ((0, 0), (P, P), (P, P), (0, 0)))
    acc = jnp.zeros_like(h4)
    for i in range(K):
        for j in range(K):
            acc = acc + hp[:, i:i + H, j:j + W, :] * p["w_dw"][i, j]
    h = acc.reshape(B, H * W, Cm)
    h = h * p["bn2_s"] + p["bn2_b"]
    h = h * jax.nn.sigmoid(h)
    pooled = jnp.mean(h, axis=1, keepdims=True)
    s = pooled @ p["w_se1"] + p["b_se1"]
    s = s * jax.nn.sigmoid(s)
    s = jax.nn.sigmoid(s @ p["w_se2"] + p["b_se2"])
    h = h * s
    o = h @ p["w_proj"]
    o = o * p["bn3_s"] + p["bn3_b"]
    if skip:
        o = o + x
    return jnp.transpose(o.reshape(B, H, W, -1), (0, 3, 1, 2))


def _bn_fold(kg, kb, km, kv, C, eps=1e-5):
    """Deterministic BatchNorm params folded into per-channel scale/bias."""
    gamma = 1.0 + 0.1 * jax.random.normal(kg, (C,))
    beta = 0.1 * jax.random.normal(kb, (C,))
    mean = 0.05 * jax.random.normal(km, (C,))
    var = 1.0 + 0.1 * jax.random.uniform(kv, (C,))
    scale = gamma / jnp.sqrt(var + eps)
    bias = beta - mean * scale
    return (scale.reshape(1, C).astype(jnp.float32),
            bias.reshape(1, C).astype(jnp.float32))


if __name__ == "__main__":
    # Module hyper-parameters (small, consistent with the forward pass).
    B, Cin, H, W = 4, 8, 16, 16
    Cout = 8
    expand_ratio = 4
    K = 3
    stride = 1
    se_ratio = 0.25
    Cm = Cin * expand_ratio                      # = 32
    se_ch = max(1, int(Cin * se_ratio))          # = 2
    skip = (stride == 1) and (Cin == Cout)       # True
    images_per_block = 2                         # grid = B//2 = 2 (>=2 parallel steps
                                                 # for v7x dual TCs), N = 2*HW = 512 lanes

    key = jax.random.PRNGKey(0)
    keys = jax.random.split(key, 20)

    raw = {}
    # expand 1x1 conv weight: torch (Cm, Cin, 1, 1) -> matmul form (Cin, Cm)
    raw["w_exp"] = (0.1 * jax.random.normal(keys[0], (Cin, Cm))).astype(jnp.float32)
    raw["bn1_s"], raw["bn1_b"] = _bn_fold(keys[1], keys[2], keys[3], keys[4], Cm)
    # depthwise conv weight: torch (Cm, 1, K, K) -> (K, K, Cm)
    raw["w_dw"] = (0.1 * jax.random.normal(keys[5], (K, K, Cm))).astype(jnp.float32)
    raw["bn2_s"], raw["bn2_b"] = _bn_fold(keys[6], keys[7], keys[8], keys[9], Cm)
    # SE convs (with bias): torch (se, Cm, 1, 1) / (Cm, se, 1, 1)
    raw["w_se1"] = (0.1 * jax.random.normal(keys[10], (Cm, se_ch))).astype(jnp.float32)
    raw["b_se1"] = (0.05 * jax.random.normal(keys[11], (se_ch,))).reshape(1, se_ch).astype(jnp.float32)
    raw["w_se2"] = (0.1 * jax.random.normal(keys[12], (se_ch, Cm))).astype(jnp.float32)
    raw["b_se2"] = (0.05 * jax.random.normal(keys[13], (Cm,))).reshape(1, Cm).astype(jnp.float32)
    # project 1x1 conv weight: torch (Cout, Cm, 1, 1) -> (Cm, Cout)
    raw["w_proj"] = (0.1 * jax.random.normal(keys[14], (Cm, Cout))).astype(jnp.float32)
    raw["bn3_s"], raw["bn3_b"] = _bn_fold(keys[15], keys[16], keys[17], keys[18], Cout)

    x = jax.random.normal(keys[19], (B, Cin, H, W), jnp.float32)   # NCHW, like PyTorch

    kparams = prepare_kernel_params(raw, H=H, W=W, images_per_block=images_per_block,
                                    matmul_dtype=jnp.bfloat16)
    out = mbconv_forward(x, kparams, kernel_size=K, skip=skip)
    out = jax.block_until_ready(out)

    ref = mbconv_reference(x, raw, K=K, skip=skip)
    assert out.shape == (B, Cout, H, W)
    assert bool(jnp.all(jnp.isfinite(out)))
    max_err = float(jnp.max(jnp.abs(out - ref)))
    assert bool(jnp.allclose(out, ref, atol=1e-2, rtol=1e-2)), f"max err {max_err}"
    print("KERNEL_OK")
</pallas_src>

<mosaic_0001>
module attributes {stable_mosaic.version = 11 : i64} {
  func.func @mbconv_kernel(%arg0: i32, %arg1: memref<8x512xf32, #tpu.memory_space<vmem>>, %arg2: memref<32x8xbf16, #tpu.memory_space<vmem>>, %arg3: memref<32x1xf32, #tpu.memory_space<vmem>>, %arg4: memref<9x32x512xf32, #tpu.memory_space<vmem>>, %arg5: memref<32x1xf32, #tpu.memory_space<vmem>>, %arg6: memref<32x2xf32, #tpu.memory_space<vmem>>, %arg7: memref<1x2xf32, #tpu.memory_space<vmem>>, %arg8: memref<32x2xf32, #tpu.memory_space<vmem>>, %arg9: memref<32x1xf32, #tpu.memory_space<vmem>>, %arg10: memref<8x32xbf16, #tpu.memory_space<vmem>>, %arg11: memref<8x1xf32, #tpu.memory_space<vmem>>, %arg12: memref<8x512xf32, #tpu.memory_space<vmem>>) attributes {dimension_semantics = [#tpu.dimension_semantics<parallel>], iteration_bounds = array<i64: 2>, scalar_prefetch = 0 : i64, scratch_operands = 0 : i64, tpu.core_type = #tpu.core_type<tc>, window_params = [{transform_indices = @transform_0, window_bounds = array<i64: 8, 512>}, {pipeline_mode = #tpu.pipeline_mode<synchronous>, transform_indices = @transform_1, window_bounds = array<i64: 32, 8>}, {pipeline_mode = #tpu.pipeline_mode<synchronous>, transform_indices = @transform_2, window_bounds = array<i64: 32, 1>}, {pipeline_mode = #tpu.pipeline_mode<synchronous>, transform_indices = @transform_3, window_bounds = array<i64: 9, 32, 512>}, {pipeline_mode = #tpu.pipeline_mode<synchronous>, transform_indices = @transform_4, window_bounds = array<i64: 32, 1>}, {pipeline_mode = #tpu.pipeline_mode<synchronous>, transform_indices = @transform_5, window_bounds = array<i64: 32, 2>}, {pipeline_mode = #tpu.pipeline_mode<synchronous>, transform_indices = @transform_6, window_bounds = array<i64: 1, 2>}, {pipeline_mode = #tpu.pipeline_mode<synchronous>, transform_indices = @transform_7, window_bounds = array<i64: 32, 2>}, {pipeline_mode = #tpu.pipeline_mode<synchronous>, transform_indices = @transform_8, window_bounds = array<i64: 32, 1>}, {pipeline_mode = #tpu.pipeline_mode<synchronous>, transform_indices = @transform_9, window_bounds = array<i64: 8, 32>}, {pipeline_mode = #tpu.pipeline_mode<synchronous>, transform_indices = @transform_10, window_bounds = array<i64: 8, 1>}, {transform_indices = @transform_11, window_bounds = array<i64: 8, 512>}]} {
    %c0 = arith.constant 0 : index
    %c0_0 = arith.constant 0 : index
    %0 = vector.load %arg1[%c0, %c0_0] : memref<8x512xf32, #tpu.memory_space<vmem>>, vector<8x512xf32>
    %c0_1 = arith.constant 0 : index
    %c0_2 = arith.constant 0 : index
    %1 = vector.load %arg2[%c0_1, %c0_2] : memref<32x8xbf16, #tpu.memory_space<vmem>>, vector<32x8xbf16>
    %2 = arith.truncf %0 : vector<8x512xf32> to vector<8x512xbf16>
    %cst = arith.constant dense<0.000000e+00> : vector<32x512xf32>
    %3 = tpu.matmul %1, %2, %cst {dimension_numbers = #tpu.dot_dimension_numbers<[1], [0], [0], [1], [0, 0, 1, 1], [], []>} : vector<32x8xbf16>, vector<8x512xbf16>, vector<32x512xf32> -> vector<32x512xf32>
    %c0_3 = arith.constant 0 : index
    %c0_4 = arith.constant 0 : index
    %4 = vector.load %arg3[%c0_3, %c0_4] : memref<32x1xf32, #tpu.memory_space<vmem>>, vector<32x1xf32>
    %5 = vector.broadcast %4 : vector<32x1xf32> to vector<32x512xf32>
    %6 = arith.addf %3, %5 : vector<32x512xf32>
    %cst_5 = arith.constant 0.000000e+00 : f32
    %7 = vector.broadcast %cst_5 : f32 to vector<32x512xf32>
    %8 = arith.subf %7, %6 : vector<32x512xf32>
    %9 = math.exp %8 : vector<32x512xf32>
    %cst_6 = arith.constant 1.000000e+00 : f32
    %10 = vector.broadcast %cst_6 : f32 to vector<32x512xf32>
    %11 = arith.addf %10, %9 : vector<32x512xf32>
    %12 = tpu.reciprocal %11 {approx = true} : vector<32x512xf32> -> vector<32x512xf32>
    %13 = arith.mulf %6, %12 : vector<32x512xf32>
    %c4 = arith.constant 4 : index
    %c0_7 = arith.constant 0 : index
    %c0_8 = arith.constant 0 : index
    %14 = vector.load %arg4[%c4, %c0_7, %c0_8] : memref<9x32x512xf32, #tpu.memory_space<vmem>>, vector<1x32x512xf32>
    %15 = vector.shape_cast %14 : vector<1x32x512xf32> to vector<32x512xf32>
    %16 = arith.mulf %15, %13 : vector<32x512xf32>
    %c0_9 = arith.constant 0 : index
    %c0_10 = arith.constant 0 : index
    %c0_11 = arith.constant 0 : index
    %17 = vector.load %arg4[%c0_9, %c0_10, %c0_11] : memref<9x32x512xf32, #tpu.memory_space<vmem>>, vector<1x32x512xf32>
    %18 = vector.shape_cast %17 : vector<1x32x512xf32> to vector<32x512xf32>
    %c17_i32 = arith.constant 17 : i32
    %19 = tpu.dynamic_rotate %13 by %c17_i32 dim 1 : vector<32x512xf32>, i32 -> vector<32x512xf32>
    %20 = arith.mulf %18, %19 : vector<32x512xf32>
    %21 = arith.addf %16, %20 : vector<32x512xf32>
    %c1 = arith.constant 1 : index
    %c0_12 = arith.constant 0 : index
    %c0_13 = arith.constant 0 : index
    %22 = vector.load %arg4[%c1, %c0_12, %c0_13] : memref<9x32x512xf32, #tpu.memory_space<vmem>>, vector<1x32x512xf32>
    %23 = vector.shape_cast %22 : vector<1x32x512xf32> to vector<32x512xf32>
    %c16_i32 = arith.constant 16 : i32
    %24 = tpu.dynamic_rotate %13 by %c16_i32 dim 1 : vector<32x512xf32>, i32 -> vector<32x512xf32>
    %25 = arith.mulf %23, %24 : vector<32x512xf32>
    %26 = arith.addf %21, %25 : vector<32x512xf32>
    %c2 = arith.constant 2 : index
    %c0_14 = arith.constant 0 : index
    %c0_15 = arith.constant 0 : index
    %27 = vector.load %arg4[%c2, %c0_14, %c0_15] : memref<9x32x512xf32, #tpu.memory_space<vmem>>, vector<1x32x512xf32>
    %28 = vector.shape_cast %27 : vector<1x32x512xf32> to vector<32x512xf32>
    %c15_i32 = arith.constant 15 : i32
    %29 = tpu.dynamic_rotate %13 by %c15_i32 dim 1 : vector<32x512xf32>, i32 -> vector<32x512xf32>
    %30 = arith.mulf %28, %29 : vector<32x512xf32>
    %31 = arith.addf %26, %30 : vector<32x512xf32>
    %c3 = arith.constant 3 : index
    %c0_16 = arith.constant 0 : index
    %c0_17 = arith.constant 0 : index
    %32 = vector.load %arg4[%c3, %c0_16, %c0_17] : memref<9x32x512xf32, #tpu.memory_space<vmem>>, vector<1x32x512xf32>
    %33 = vector.shape_cast %32 : vector<1x32x512xf32> to vector<32x512xf32>
    %c1_i32 = arith.constant 1 : i32
    %34 = tpu.dynamic_rotate %13 by %c1_i32 dim 1 : vector<32x512xf32>, i32 -> vector<32x512xf32>
    %35 = arith.mulf %33, %34 : vector<32x512xf32>
    %36 = arith.addf %31, %35 : vector<32x512xf32>
    %c5 = arith.constant 5 : index
    %c0_18 = arith.constant 0 : index
    %c0_19 = arith.constant 0 : index
    %37 = vector.load %arg4[%c5, %c0_18, %c0_19] : memref<9x32x512xf32, #tpu.memory_space<vmem>>, vector<1x32x512xf32>
    %38 = vector.shape_cast %37 : vector<1x32x512xf32> to vector<32x512xf32>
    %c511_i32 = arith.constant 511 : i32
    %39 = tpu.dynamic_rotate %13 by %c511_i32 dim 1 : vector<32x512xf32>, i32 -> vector<32x512xf32>
    %40 = arith.mulf %38, %39 : vector<32x512xf32>
    %41 = arith.addf %36, %40 : vector<32x512xf32>
    %c6 = arith.constant 6 : index
    %c0_20 = arith.constant 0 : index
    %c0_21 = arith.constant 0 : index
    %42 = vector.load %arg4[%c6, %c0_20, %c0_21] : memref<9x32x512xf32, #tpu.memory_space<vmem>>, vector<1x32x512xf32>
    %43 = vector.shape_cast %42 : vector<1x32x512xf32> to vector<32x512xf32>
    %c497_i32 = arith.constant 497 : i32
    %44 = tpu.dynamic_rotate %13 by %c497_i32 dim 1 : vector<32x512xf32>, i32 -> vector<32x512xf32>
    %45 = arith.mulf %43, %44 : vector<32x512xf32>
    %46 = arith.addf %41, %45 : vector<32x512xf32>
    %c7 = arith.constant 7 : index
    %c0_22 = arith.constant 0 : index
    %c0_23 = arith.constant 0 : index
    %47 = vector.load %arg4[%c7, %c0_22, %c0_23] : memref<9x32x512xf32, #tpu.memory_space<vmem>>, vector<1x32x512xf32>
    %48 = vector.shape_cast %47 : vector<1x32x512xf32> to vector<32x512xf32>
    %c496_i32 = arith.constant 496 : i32
    %49 = tpu.dynamic_rotate %13 by %c496_i32 dim 1 : vector<32x512xf32>, i32 -> vector<32x512xf32>
    %50 = arith.mulf %48, %49 : vector<32x512xf32>
    %51 = arith.addf %46, %50 : vector<32x512xf32>
    %c8 = arith.constant 8 : index
    %c0_24 = arith.constant 0 : index
    %c0_25 = arith.constant 0 : index
    %52 = vector.load %arg4[%c8, %c0_24, %c0_25] : memref<9x32x512xf32, #tpu.memory_space<vmem>>, vector<1x32x512xf32>
    %53 = vector.shape_cast %52 : vector<1x32x512xf32> to vector<32x512xf32>
    %c495_i32 = arith.constant 495 : i32
    %54 = tpu.dynamic_rotate %13 by %c495_i32 dim 1 : vector<32x512xf32>, i32 -> vector<32x512xf32>
    %55 = arith.mulf %53, %54 : vector<32x512xf32>
    %56 = arith.addf %51, %55 : vector<32x512xf32>
    %c0_26 = arith.constant 0 : index
    %c0_27 = arith.constant 0 : index
    %57 = vector.load %arg5[%c0_26, %c0_27] : memref<32x1xf32, #tpu.memory_space<vmem>>, vector<32x1xf32>
    %58 = vector.broadcast %57 : vector<32x1xf32> to vector<32x512xf32>
    %59 = arith.addf %56, %58 : vector<32x512xf32>
    %cst_28 = arith.constant 0.000000e+00 : f32
    %60 = vector.broadcast %cst_28 : f32 to vector<32x512xf32>
    %61 = arith.subf %60, %59 : vector<32x512xf32>
    %62 = math.exp %61 : vector<32x512xf32>
    %cst_29 = arith.constant 1.000000e+00 : f32
    %63 = vector.broadcast %cst_29 : f32 to vector<32x512xf32>
    %64 = arith.addf %63, %62 : vector<32x512xf32>
    %65 = tpu.reciprocal %64 {approx = true} : vector<32x512xf32> -> vector<32x512xf32>
    %66 = arith.mulf %59, %65 : vector<32x512xf32>
    %67 = vector.extract_strided_slice %66 {offsets = [0, 0], sizes = [32, 256], strides = [1, 1]} : vector<32x512xf32> to vector<32x256xf32>
    %cst_30 = arith.constant dense<0.000000e+00> : vector<32xf32>
    %68 = vector.multi_reduction <add>, %67, %cst_30 [1] : vector<32x256xf32> to vector<32xf32>
    %69 = vector.shape_cast %68 : vector<32xf32> to vector<32x1xf32>
    %cst_31 = arith.constant 2.560000e+02 : f32
    %70 = vector.broadcast %cst_31 : f32 to vector<32x1xf32>
    %71 = arith.divf %69, %70 : vector<32x1xf32>
    %c0_32 = arith.constant 0 : index
    %c0_33 = arith.constant 0 : index
    %72 = vector.load %arg6[%c0_32, %c0_33] : memref<32x2xf32, #tpu.memory_space<vmem>>, vector<32x2xf32>
    %73 = vector.broadcast %71 : vector<32x1xf32> to vector<32x2xf32>
    %74 = arith.mulf %72, %73 : vector<32x2xf32>
    %cst_34 = arith.constant dense<0.000000e+00> : vector<2xf32>
    %75 = vector.multi_reduction <add>, %74, %cst_34 [0] : vector<32x2xf32> to vector<2xf32>
    %76 = vector.shape_cast %75 : vector<2xf32> to vector<1x2xf32>
    %c0_35 = arith.constant 0 : index
    %c0_36 = arith.constant 0 : index
    %77 = vector.load %arg7[%c0_35, %c0_36] : memref<1x2xf32, #tpu.memory_space<vmem>>, vector<1x2xf32>
    %78 = arith.addf %76, %77 : vector<1x2xf32>
    %cst_37 = arith.constant 0.000000e+00 : f32
    %79 = vector.broadcast %cst_37 : f32 to vector<1x2xf32>
    %80 = arith.subf %79, %78 : vector<1x2xf32>
    %81 = math.exp %80 : vector<1x2xf32>
    %cst_38 = arith.constant 1.000000e+00 : f32
    %82 = vector.broadcast %cst_38 : f32 to vector<1x2xf32>
    %83 = arith.addf %82, %81 : vector<1x2xf32>
    %84 = tpu.reciprocal %83 {approx = true} : vector<1x2xf32> -> vector<1x2xf32>
    %85 = arith.mulf %78, %84 : vector<1x2xf32>
    %c0_39 = arith.constant 0 : index
    %c0_40 = arith.constant 0 : index
    %86 = vector.load %arg8[%c0_39, %c0_40] : memref<32x2xf32, #tpu.memory_space<vmem>>, vector<32x2xf32>
    %87 = vector.broadcast %85 : vector<1x2xf32> to vector<32x2xf32>
    %88 = arith.mulf %86, %87 : vector<32x2xf32>
    %cst_41 = arith.constant dense<0.000000e+00> : vector<32xf32>
    %89 = vector.multi_reduction <add>, %88, %cst_41 [1] : vector<32x2xf32> to vector<32xf32>
    %90 = vector.shape_cast %89 : vector<32xf32> to vector<32x1xf32>
    %c0_42 = arith.constant 0 : index
    %c0_43 = arith.constant 0 : index
    %91 = vector.load %arg9[%c0_42, %c0_43] : memref<32x1xf32, #tpu.memory_space<vmem>>, vector<32x1xf32>
    %92 = arith.addf %90, %91 : vector<32x1xf32>
    %cst_44 = arith.constant 0.000000e+00 : f32
    %93 = vector.broadcast %cst_44 : f32 to vector<32x1xf32>
    %94 = arith.subf %93, %92 : vector<32x1xf32>
    %95 = math.exp %94 : vector<32x1xf32>
    %cst_45 = arith.constant 1.000000e+00 : f32
    %96 = vector.broadcast %cst_45 : f32 to vector<32x1xf32>
    %97 = arith.addf %96, %95 : vector<32x1xf32>
    %98 = tpu.reciprocal %97 {approx = true} : vector<32x1xf32> -> vector<32x1xf32>
    %99 = vector.broadcast %98 : vector<32x1xf32> to vector<32x256xf32>
    %100 = arith.mulf %67, %99 : vector<32x256xf32>
    %101 = vector.extract_strided_slice %66 {offsets = [0, 256], sizes = [32, 256], strides = [1, 1]} : vector<32x512xf32> to vector<32x256xf32>
    %cst_46 = arith.constant dense<0.000000e+00> : vector<32xf32>
    %102 = vector.multi_reduction <add>, %101, %cst_46 [1] : vector<32x256xf32> to vector<32xf32>
    %103 = vector.shape_cast %102 : vector<32xf32> to vector<32x1xf32>
    %cst_47 = arith.constant 2.560000e+02 : f32
    %104 = vector.broadcast %cst_47 : f32 to vector<32x1xf32>
    %105 = arith.divf %103, %104 : vector<32x1xf32>
    %c0_48 = arith.constant 0 : index
    %c0_49 = arith.constant 0 : index
    %106 = vector.load %arg6[%c0_48, %c0_49] : memref<32x2xf32, #tpu.memory_space<vmem>>, vector<32x2xf32>
    %107 = vector.broadcast %105 : vector<32x1xf32> to vector<32x2xf32>
    %108 = arith.mulf %106, %107 : vector<32x2xf32>
    %cst_50 = arith.constant dense<0.000000e+00> : vector<2xf32>
    %109 = vector.multi_reduction <add>, %108, %cst_50 [0] : vector<32x2xf32> to vector<2xf32>
    %110 = vector.shape_cast %109 : vector<2xf32> to vector<1x2xf32>
    %c0_51 = arith.constant 0 : index
    %c0_52 = arith.constant 0 : index
    %111 = vector.load %arg7[%c0_51, %c0_52] : memref<1x2xf32, #tpu.memory_space<vmem>>, vector<1x2xf32>
    %112 = arith.addf %110, %111 : vector<1x2xf32>
    %cst_53 = arith.constant 0.000000e+00 : f32
    %113 = vector.broadcast %cst_53 : f32 to vector<1x2xf32>
    %114 = arith.subf %113, %112 : vector<1x2xf32>
    %115 = math.exp %114 : vector<1x2xf32>
    %cst_54 = arith.constant 1.000000e+00 : f32
    %116 = vector.broadcast %cst_54 : f32 to vector<1x2xf32>
    %117 = arith.addf %116, %115 : vector<1x2xf32>
    %118 = tpu.reciprocal %117 {approx = true} : vector<1x2xf32> -> vector<1x2xf32>
    %119 = arith.mulf %112, %118 : vector<1x2xf32>
    %c0_55 = arith.constant 0 : index
    %c0_56 = arith.constant 0 : index
    %120 = vector.load %arg8[%c0_55, %c0_56] : memref<32x2xf32, #tpu.memory_space<vmem>>, vector<32x2xf32>
    %121 = vector.broadcast %119 : vector<1x2xf32> to vector<32x2xf32>
    %122 = arith.mulf %120, %121 : vector<32x2xf32>
    %cst_57 = arith.constant dense<0.000000e+00> : vector<32xf32>
    %123 = vector.multi_reduction <add>, %122, %cst_57 [1] : vector<32x2xf32> to vector<32xf32>
    %124 = vector.shape_cast %123 : vector<32xf32> to vector<32x1xf32>
    %c0_58 = arith.constant 0 : index
    %c0_59 = arith.constant 0 : index
    %125 = vector.load %arg9[%c0_58, %c0_59] : memref<32x1xf32, #tpu.memory_space<vmem>>, vector<32x1xf32>
    %126 = arith.addf %124, %125 : vector<32x1xf32>
    %cst_60 = arith.constant 0.000000e+00 : f32
    %127 = vector.broadcast %cst_60 : f32 to vector<32x1xf32>
    %128 = arith.subf %127, %126 : vector<32x1xf32>
    %129 = math.exp %128 : vector<32x1xf32>
    %cst_61 = arith.constant 1.000000e+00 : f32
    %130 = vector.broadcast %cst_61 : f32 to vector<32x1xf32>
    %131 = arith.addf %130, %129 : vector<32x1xf32>
    %132 = tpu.reciprocal %131 {approx = true} : vector<32x1xf32> -> vector<32x1xf32>
    %133 = vector.broadcast %132 : vector<32x1xf32> to vector<32x256xf32>
    %134 = arith.mulf %101, %133 : vector<32x256xf32>
    %135 = tpu.concatenate %100, %134 in 1 : vector<32x256xf32>, vector<32x256xf32> -> vector<32x512xf32>
    %c0_62 = arith.constant 0 : index
    %c0_63 = arith.constant 0 : index
    %136 = vector.load %arg10[%c0_62, %c0_63] : memref<8x32xbf16, #tpu.memory_space<vmem>>, vector<8x32xbf16>
    %137 = arith.truncf %135 : vector<32x512xf32> to vector<32x512xbf16>
    %cst_64 = arith.constant dense<0.000000e+00> : vector<8x512xf32>
    %138 = tpu.matmul %136, %137, %cst_64 {dimension_numbers = #tpu.dot_dimension_numbers<[1], [0], [0], [1], [0, 0, 1, 1], [], []>} : vector<8x32xbf16>, vector<32x512xbf16>, vector<8x512xf32> -> vector<8x512xf32>
    %c0_65 = arith.constant 0 : index
    %c0_66 = arith.constant 0 : index
    %139 = vector.load %arg11[%c0_65, %c0_66] : memref<8x1xf32, #tpu.memory_space<vmem>>, vector<8x1xf32>
    %140 = vector.broadcast %139 : vector<8x1xf32> to vector<8x512xf32>
    %141 = arith.addf %138, %140 : vector<8x512xf32>
    %142 = arith.addf %141, %0 : vector<8x512xf32>
    %c0_67 = arith.constant 0 : index
    %c0_68 = arith.constant 0 : index
    %143 = vector.load %arg12[%c0_67, %c0_68] : memref<8x512xf32, #tpu.memory_space<vmem>>, vector<8x512xf32>
    tpu.vector_store %arg12[%c0_67, %c0_68], %142 {strides = array<i32>} : memref<8x512xf32, #tpu.memory_space<vmem>>, vector<8x512xf32>,
    return
  }
  func.func @transform_0(%arg0: i32) -> (i32, i32) {
    %c0_i32 = arith.constant 0 : i32
    %c0_i32_0 = arith.constant 0 : i32
    return %c0_i32, %arg0 : i32, i32
  }
  func.func @transform_1(%arg0: i32) -> (i32, i32) {
    %c0_i32 = arith.constant 0 : i32
    %c0_i32_0 = arith.constant 0 : i32
    %c0_i32_1 = arith.constant 0 : i32
    return %c0_i32, %c0_i32_0 : i32, i32
  }
  func.func @transform_2(%arg0: i32) -> (i32, i32) {
    %c0_i32 = arith.constant 0 : i32
    %c0_i32_0 = arith.constant 0 : i32
    %c0_i32_1 = arith.constant 0 : i32
    return %c0_i32, %c0_i32_0 : i32, i32
  }
  func.func @transform_3(%arg0: i32) -> (i32, i32, i32) {
    %c0_i32 = arith.constant 0 : i32
    %c0_i32_0 = arith.constant 0 : i32
    %c0_i32_1 = arith.constant 0 : i32
    %c0_i32_2 = arith.constant 0 : i32
    return %c0_i32, %c0_i32_0, %c0_i32_1 : i32, i32, i32
  }
  func.func @transform_4(%arg0: i32) -> (i32, i32) {
    %c0_i32 = arith.constant 0 : i32
    %c0_i32_0 = arith.constant 0 : i32
    %c0_i32_1 = arith.constant 0 : i32
    return %c0_i32, %c0_i32_0 : i32, i32
  }
  func.func @transform_5(%arg0: i32) -> (i32, i32) {
    %c0_i32 = arith.constant 0 : i32
    %c0_i32_0 = arith.constant 0 : i32
    %c0_i32_1 = arith.constant 0 : i32
    return %c0_i32, %c0_i32_0 : i32, i32
  }
  func.func @transform_6(%arg0: i32) -> (i32, i32) {
    %c0_i32 = arith.constant 0 : i32
    %c0_i32_0 = arith.constant 0 : i32
    %c0_i32_1 = arith.constant 0 : i32
    return %c0_i32, %c0_i32_0 : i32, i32
  }
  func.func @transform_7(%arg0: i32) -> (i32, i32) {
    %c0_i32 = arith.constant 0 : i32
    %c0_i32_0 = arith.constant 0 : i32
    %c0_i32_1 = arith.constant 0 : i32
    return %c0_i32, %c0_i32_0 : i32, i32
  }
  func.func @transform_8(%arg0: i32) -> (i32, i32) {
    %c0_i32 = arith.constant 0 : i32
    %c0_i32_0 = arith.constant 0 : i32
    %c0_i32_1 = arith.constant 0 : i32
    return %c0_i32, %c0_i32_0 : i32, i32
  }
  func.func @transform_9(%arg0: i32) -> (i32, i32) {
    %c0_i32 = arith.constant 0 : i32
    %c0_i32_0 = arith.constant 0 : i32
    %c0_i32_1 = arith.constant 0 : i32
    return %c0_i32, %c0_i32_0 : i32, i32
  }
  func.func @transform_10(%arg0: i32) -> (i32, i32) {
    %c0_i32 = arith.constant 0 : i32
    %c0_i32_0 = arith.constant 0 : i32
    %c0_i32_1 = arith.constant 0 : i32
    return %c0_i32, %c0_i32_0 : i32, i32
  }
  func.func @transform_11(%arg0: i32) -> (i32, i32) {
    %c0_i32 = arith.constant 0 : i32
    %c0_i32_0 = arith.constant 0 : i32
    return %c0_i32, %arg0 : i32, i32
  }
}

</mosaic_0001>

<llo_original>
// kernel: tpu_custom_call.1
$region0: #{tpu_custom_call.1}
  #allocation0 [shape = 'u32[]', space=smem, size = 0x4, offset = 0x4, fixed_abs, tag = 'smem constant byte address 0x4 - core index']
  #allocation1 [shape = 'u32[72,128]{1,0:T(1,128)}', space=vmem, size = 0x9000, scoped, tag = 'internal scratch']
  %s0 = inlined_call_operand.vmem [shape: f32[8,1024], index: 0, kind: input, shape index: {}]
  %s1 = inlined_call_operand.vmem [shape: bf16[32,8], index: 1, kind: input, shape index: {}]
  %s2 = inlined_call_operand.vmem [shape: f32[32,1], index: 2, kind: input, shape index: {}]
  %s3 = inlined_call_operand.hbm [shape: f32[9,32,512], index: 3, kind: input, shape index: {}]
  %s4 = inlined_call_operand.vmem [shape: f32[32,1], index: 4, kind: input, shape index: {}]
  %s5 = inlined_call_operand.vmem [shape: f32[32,2], index: 5, kind: input, shape index: {}]
  %s6 = inlined_call_operand.vmem [shape: f32[1,2], index: 6, kind: input, shape index: {}]
  %s7 = inlined_call_operand.vmem [shape: f32[32,2], index: 7, kind: input, shape index: {}]
  %s8 = inlined_call_operand.vmem [shape: f32[32,1], index: 8, kind: input, shape index: {}]
  %s9 = inlined_call_operand.vmem [shape: bf16[8,32], index: 9, kind: input, shape index: {}]
  %s10 = inlined_call_operand.vmem [shape: f32[8,1], index: 10, kind: input, shape index: {}]
  %s11 = inlined_call_operand.hbm [shape: f32[8,1024], index: 11, kind: output, shape index: {}]
  %s12 = sld [smem:[#allocation0]]
  $region81: #{tpu_custom_call.1} parent=0
    _
  %s14 = ssub.s32 1, %s12
  %s15 = scalar_select 0, %s14, %s12
  $region1: #{tpu_custom_call.1} parent=0
    #allocation2 [shape = 'u8[589824]{0}', space=vmem, size = 0x90000, scoped, tag = 'input window, operand 3, single buffered']
    #allocation3 [shape = 's32[2]{0}', space=sflag, size = 0x8, scoped, tag = 'scoped memory for tpu_custom_call.1']
    #allocation4 [shape = 's32[2]{0}', space=sflag, size = 0x8, scoped, tag = 'scoped memory for tpu_custom_call.1']
    #allocation5 [shape = 'u8[32768]{0}', space=vmem, size = 0x8000, scoped, tag = 'output window, operand 0']
    %16 = vsyncpa [#allocation3], 0
    %17 = vsyncpa [#allocation4], 0
    %s18 = scalar_lea.sflag [#allocation4], 1
    %19 = vsyncpa %s18, 0
    loop: start=0, step=1, limit=4
    $region2: #{tpu_custom_call.1} parent=1 // loop_pre_header
      _
    $region3: #{tpu_custom_call.1} parent=1 // loop_header
      %s21 = sphi 0, %s25
      %p22 = scmp.ge.s32.totalorder %s21, 4
      %s31 = sphi 0, %s33
      %s34 = sphi 0, %s31
      %s35 = sphi 0, %s34
      %s51 = sphi 0, %s35
      %s55 = sphi 0, %s55
      %s57 = sphi 0, %s55
      %s58 = sphi 0, %s57
      %s72 = sphi 0, %s58
      %s76 = sphi 0, %s76
      %s78 = sphi 0, %s76
      %s79 = sphi 0, %s78
      %s93 = sphi 0, %s79
      %s97 = sphi 0, %s97
      %s99 = sphi 0, %s97
      %s100 = sphi 0, %s99
      %s114 = sphi 0, %s100
      %s118 = sphi 0, %s118
      %s120 = sphi 0, %s118
      %s121 = sphi 0, %s120
      %s135 = sphi 0, %s121
      %s139 = sphi 0, %s139
      %s141 = sphi 0, %s139
      %s142 = sphi 0, %s141
      %s156 = sphi 0, %s142
      %s160 = sphi 0, %s160
      %s162 = sphi 0, %s160
      %s163 = sphi 0, %s162
      %s177 = sphi 0, %s163
      %s181 = sphi 0, %s181
      %s183 = sphi 0, %s181
      %s184 = sphi 0, %s183
      %s198 = sphi 0, %s184
      %s202 = sphi 0, %s202
      %s204 = sphi 0, %s202
      %s205 = sphi 0, %s204
      %s219 = sphi 0, %s205
      %s223 = sphi 0, %s223
      %s225 = sphi 0, %s223
      %s226 = sphi 0, %s225
      %s240 = sphi 0, %s226
      %s244 = sphi 0, %s244
      %s246 = sphi 0, %s244
      %s247 = sphi 0, %s246
      %s261 = sphi 0, %s247
      %s267 = sphi 0, %s269
      %s270 = sphi 0, %s267
      %s271 = sphi 0, %s270
      %s287 = sphi 0, %s271
    $region4: #{tpu_custom_call.1} parent=1 // loop_header_branch
      %24 = sbr.rel (%p22) target = $region8
    $region5: #{tpu_custom_call.1} parent=1 // loop_body
      %s26 = ssub.s32 %s21, 1
      %s27 = ssub.s32 %s21, 2
      %s28 = sadd.s32 %s21, 1
      %s29 = ssub.s32 %s21, %s28
      %p30 = scmp.eq.s32.totalorder %s29, 0
      %s32 = sadd.s32 %s31, 1
      %s33 = scalar_select %p30, %s31, %s32
      %p36 = pneg %p30
      %p37 = scmp.eq.s32.totalorder %s21, 1
      %p38 = por %p36, %p37
      %p39 = scmp.ne.s32.totalorder %s31, %s34
      %p40 = scmp.eq.s32.totalorder %s21, 0
      %p41 = por %p39, %p40
      %p42 = scmp.ne.s32.totalorder %s31, %s34
      %p43 = scmp.eq.s32.totalorder %s26, 1
      %p44 = por %p42, %p43
      %p45 = scmp.ne.s32.totalorder %s34, %s35
      %p46 = scmp.eq.s32.totalorder %s26, 0
      %p47 = por %p45, %p46
      %p48 = scmp.ne.s32.totalorder %s34, %s35
      %p49 = scmp.eq.s32.totalorder %s27, 1
      %p50 = por %p48, %p49
      %p52 = scmp.ne.s32.totalorder %s35, %s51
      %p53 = scmp.eq.s32.totalorder %s27, 0
      %p54 = por %p52, %p53
      %s56 = sadd.s32 %s55, 1
      %p59 = scmp.eq.s32.totalorder %s21, 1
      %p60 = scmp.ne.s32.totalorder %s55, %s57
      %p61 = scmp.eq.s32.totalorder %s21, 0
      %p62 = por %p60, %p61
      %p63 = scmp.ne.s32.totalorder %s55, %s57
      %p64 = scmp.eq.s32.totalorder %s26, 1
      %p65 = por %p63, %p64
      %p66 = scmp.ne.s32.totalorder %s57, %s58
      %p67 = scmp.eq.s32.totalorder %s26, 0
      %p68 = por %p66, %p67
      %p69 = scmp.ne.s32.totalorder %s57, %s58
      %p70 = scmp.eq.s32.totalorder %s27, 1
      %p71 = por %p69, %p70
      %p73 = scmp.ne.s32.totalorder %s58, %s72
      %p74 = scmp.eq.s32.totalorder %s27, 0
      %p75 = por %p73, %p74
      %s77 = sadd.s32 %s76, 1
      %p80 = scmp.eq.s32.totalorder %s21, 1
      %p81 = scmp.ne.s32.totalorder %s76, %s78
      %p82 = scmp.eq.s32.totalorder %s21, 0
      %p83 = por %p81, %p82
      %p84 = scmp.ne.s32.totalorder %s76, %s78
      %p85 = scmp.eq.s32.totalorder %s26, 1
      %p86 = por %p84, %p85
      %p87 = scmp.ne.s32.totalorder %s78, %s79
      %p88 = scmp.eq.s32.totalorder %s26, 0
      %p89 = por %p87, %p88
      %p90 = scmp.ne.s32.totalorder %s78, %s79
      %p91 = scmp.eq.s32.totalorder %s27, 1
      %p92 = por %p90, %p91
      %p94 = scmp.ne.s32.totalorder %s79, %s93
      %p95 = scmp.eq.s32.totalorder %s27, 0
      %p96 = por %p94, %p95
      %s98 = sadd.s32 %s97, 1
      %p101 = scmp.eq.s32.totalorder %s21, 1
      %p102 = scmp.ne.s32.totalorder %s97, %s99
      %p103 = scmp.eq.s32.totalorder %s21, 0
      %p104 = por %p102, %p103
      %p105 = scmp.ne.s32.totalorder %s97, %s99
      %p106 = scmp.eq.s32.totalorder %s26, 1
      %p107 = por %p105, %p106
      %p108 = scmp.ne.s32.totalorder %s99, %s100
      %p109 = scmp.eq.s32.totalorder %s26, 0
      %p110 = por %p108, %p109
      %p111 = scmp.ne.s32.totalorder %s99, %s100
      %p112 = scmp.eq.s32.totalorder %s27, 1
      %p113 = por %p111, %p112
      %p115 = scmp.ne.s32.totalorder %s100, %s114
      %p116 = scmp.eq.s32.totalorder %s27, 0
      %p117 = por %p115, %p116
      %s119 = sadd.s32 %s118, 1
      %p122 = scmp.eq.s32.totalorder %s21, 1
      %p123 = scmp.ne.s32.totalorder %s118, %s120
      %p124 = scmp.eq.s32.totalorder %s21, 0
      %p125 = por %p123, %p124
      %p126 = scmp.ne.s32.totalorder %s118, %s120
      %p127 = scmp.eq.s32.totalorder %s26, 1
      %p128 = por %p126, %p127
      %p129 = scmp.ne.s32.totalorder %s120, %s121
      %p130 = scmp.eq.s32.totalorder %s26, 0
      %p131 = por %p129, %p130
      %p132 = scmp.ne.s32.totalorder %s120, %s121
      %p133 = scmp.eq.s32.totalorder %s27, 1
      %p134 = por %p132, %p133
      %p136 = scmp.ne.s32.totalorder %s121, %s135
      %p137 = scmp.eq.s32.totalorder %s27, 0
      %p138 = por %p136, %p137
      %s140 = sadd.s32 %s139, 1
      %p143 = scmp.eq.s32.totalorder %s21, 1
      %p144 = scmp.ne.s32.totalorder %s139, %s141
      %p145 = scmp.eq.s32.totalorder %s21, 0
      %p146 = por %p144, %p145
      %p147 = scmp.ne.s32.totalorder %s139, %s141
      %p148 = scmp.eq.s32.totalorder %s26, 1
      %p149 = por %p147, %p148
      %p150 = scmp.ne.s32.totalorder %s141, %s142
      %p151 = scmp.eq.s32.totalorder %s26, 0
      %p152 = por %p150, %p151
      %p153 = scmp.ne.s32.totalorder %s141, %s142
      %p154 = scmp.eq.s32.totalorder %s27, 1
      %p155 = por %p153, %p154
      %p157 = scmp.ne.s32.totalorder %s142, %s156
      %p158 = scmp.eq.s32.totalorder %s27, 0
      %p159 = por %p157, %p158
      %s161 = sadd.s32 %s160, 1
      %p164 = scmp.eq.s32.totalorder %s21, 1
      %p165 = scmp.ne.s32.totalorder %s160, %s162
      %p166 = scmp.eq.s32.totalorder %s21, 0
      %p167 = por %p165, %p166
      %p168 = scmp.ne.s32.totalorder %s160, %s162
      %p169 = scmp.eq.s32.totalorder %s26, 1
      %p170 = por %p168, %p169
      %p171 = scmp.ne.s32.totalorder %s162, %s163
      %p172 = scmp.eq.s32.totalorder %s26, 0
      %p173 = por %p171, %p172
      %p174 = scmp.ne.s32.totalorder %s162, %s163
      %p175 = scmp.eq.s32.totalorder %s27, 1
      %p176 = por %p174, %p175
      %p178 = scmp.ne.s32.totalorder %s163, %s177
      %p179 = scmp.eq.s32.totalorder %s27, 0
      %p180 = por %p178, %p179
      %s182 = sadd.s32 %s181, 1
      %p185 = scmp.eq.s32.totalorder %s21, 1
      %p186 = scmp.ne.s32.totalorder %s181, %s183
      %p187 = scmp.eq.s32.totalorder %s21, 0
      %p188 = por %p186, %p187
      %p189 = scmp.ne.s32.totalorder %s181, %s183
      %p190 = scmp.eq.s32.totalorder %s26, 1
      %p191 = por %p189, %p190
      %p192 = scmp.ne.s32.totalorder %s183, %s184
      %p193 = scmp.eq.s32.totalorder %s26, 0
      %p194 = por %p192, %p193
      %p195 = scmp.ne.s32.totalorder %s183, %s184
      %p196 = scmp.eq.s32.totalorder %s27, 1
      %p197 = por %p195, %p196
      %p199 = scmp.ne.s32.totalorder %s184, %s198
      %p200 = scmp.eq.s32.totalorder %s27, 0
      %p201 = por %p199, %p200
      %s203 = sadd.s32 %s202, 1
      %p206 = scmp.eq.s32.totalorder %s21, 1
      %p207 = scmp.ne.s32.totalorder %s202, %s204
      %p208 = scmp.eq.s32.totalorder %s21, 0
      %p209 = por %p207, %p208
      %p210 = scmp.ne.s32.totalorder %s202, %s204
      %p211 = scmp.eq.s32.totalorder %s26, 1
      %p212 = por %p210, %p211
      %p213 = scmp.ne.s32.totalorder %s204, %s205
      %p214 = scmp.eq.s32.totalorder %s26, 0
      %p215 = por %p213, %p214
      %p216 = scmp.ne.s32.totalorder %s204, %s205
      %p217 = scmp.eq.s32.totalorder %s27, 1
      %p218 = por %p216, %p217
      %p220 = scmp.ne.s32.totalorder %s205, %s219
      %p221 = scmp.eq.s32.totalorder %s27, 0
      %p222 = por %p220, %p221
      %s224 = sadd.s32 %s223, 1
      %p227 = scmp.eq.s32.totalorder %s21, 1
      %p228 = scmp.ne.s32.totalorder %s223, %s225
      %p229 = scmp.eq.s32.totalorder %s21, 0
      %p230 = por %p228, %p229
      %p231 = scmp.ne.s32.totalorder %s223, %s225
      %p232 = scmp.eq.s32.totalorder %s26, 1
      %p233 = por %p231, %p232
      %p234 = scmp.ne.s32.totalorder %s225, %s226
      %p235 = scmp.eq.s32.totalorder %s26, 0
      %p236 = por %p234, %p235
      %p237 = scmp.ne.s32.totalorder %s225, %s226
      %p238 = scmp.eq.s32.totalorder %s27, 1
      %p239 = por %p237, %p238
      %p241 = scmp.ne.s32.totalorder %s226, %s240
      %p242 = scmp.eq.s32.totalorder %s27, 0
      %p243 = por %p241, %p242
      %s245 = sadd.s32 %s244, 1
      %p248 = scmp.eq.s32.totalorder %s21, 1
      %p249 = scmp.ne.s32.totalorder %s244, %s246
      %p250 = scmp.eq.s32.totalorder %s21, 0
      %p251 = por %p249, %p250
      %p252 = scmp.ne.s32.totalorder %s244, %s246
      %p253 = scmp.eq.s32.totalorder %s26, 1
      %p254 = por %p252, %p253
      %p255 = scmp.ne.s32.totalorder %s246, %s247
      %p256 = scmp.eq.s32.totalorder %s26, 0
      %p257 = por %p255, %p256
      %p258 = scmp.ne.s32.totalorder %s246, %s247
      %p259 = scmp.eq.s32.totalorder %s27, 1
      %p260 = por %p258, %p259
      %p262 = scmp.ne.s32.totalorder %s247, %s261
      %p263 = scmp.eq.s32.totalorder %s27, 0
      %p264 = por %p262, %p263
      %s265 = ssub.s32 %s21, %s28
      %p266 = scmp.eq.s32.totalorder %s265, 0
      %s268 = sadd.s32 %s267, 1
      %s269 = scalar_select %p266, %s267, %s268
      %p272 = pneg %p266
      %p273 = scmp.eq.s32.totalorder %s21, 1
      %p274 = por %p272, %p273
      %p275 = scmp.ne.s32.totalorder %s267, %s270
      %p276 = scmp.eq.s32.totalorder %s21, 0
      %p277 = por %p275, %p276
      %p278 = scmp.ne.s32.totalorder %s267, %s270
      %p279 = scmp.eq.s32.totalorder %s26, 1
      %p280 = por %p278, %p279
      %p281 = scmp.ne.s32.totalorder %s270, %s271
      %p282 = scmp.eq.s32.totalorder %s26, 0
      %p283 = por %p281, %p282
      %p284 = scmp.ne.s32.totalorder %s270, %s271
      %p285 = scmp.eq.s32.totalorder %s27, 1
      %p286 = por %p284, %p285
      %p288 = scmp.ne.s32.totalorder %s271, %s287
      %p289 = scmp.eq.s32.totalorder %s27, 0
      %p290 = por %p288, %p289
      %p291 = scmp.le.s32.totalorder 1, %s21
      %p292 = scmp.lt.s32.totalorder %s21, 3
      %p293 = pnand %p291, %p292
      %p294 = pneg %p293
      // Predicated region
      $region9: #{tpu_custom_call.1} parent=5 // pred_check
        _
      $region10: #{tpu_custom_call.1} parent=5 // pred_check_branch
        %296 = sbr.rel (%p293) target = $region12
      $region11: #{tpu_custom_call.1} parent=5 // pred_region
        %s297 = ssub.s32 %s21, 1
        // Predicated region
        $region13: #{tpu_custom_call.1} parent=11 // pred_check
          %p298 = pneg %p68
        $region14: #{tpu_custom_call.1} parent=11 // pred_check_branch
          %300 = sbr.rel (%p298) target = $region16
        $region15: #{tpu_custom_call.1} parent=11 // pred_region
          _
        $region16: #{tpu_custom_call.1} parent=11 // pred_fallthru
          _
        // Predicated region
        $region17: #{tpu_custom_call.1} parent=11 // pred_check
          %p301 = pneg %p89
        $region18: #{tpu_custom_call.1} parent=11 // pred_check_branch
          %303 = sbr.rel (%p301) target = $region20
        $region19: #{tpu_custom_call.1} parent=11 // pred_region
          _
        $region20: #{tpu_custom_call.1} parent=11 // pred_fallthru
          _
        // Predicated region
        $region21: #{tpu_custom_call.1} parent=11 // pred_check
          %p304 = pneg %p110
        $region22: #{tpu_custom_call.1} parent=11 // pred_check_branch
          %306 = sbr.rel (%p304) target = $region24
        $region23: #{tpu_custom_call.1} parent=11 // pred_region
          %308 = vsyncadd [#allocation3], 0
          %s309 = sshll.u32 %s3, 4
          %s310 = int_to_ptr.hbm [resolvable:$true] %s309
          %s311 = sshll.u32 [#allocation2], 4
          %s312 = int_to_ptr.vmem [resolvable:$true] %s311
          %317 = dma.hbm_to_vmem [thread:$0]  %s310, 18432, %s312, [#allocation3], 512, 512, 32
        $region24: #{tpu_custom_call.1} parent=11 // pred_fallthru
          _
        // Predicated region
        $region25: #{tpu_custom_call.1} parent=11 // pred_check
          %p318 = pneg %p131
        $region26: #{tpu_custom_call.1} parent=11 // pred_check_branch
          %320 = sbr.rel (%p318) target = $region28
        $region27: #{tpu_custom_call.1} parent=11 // pred_region
          _
        $region28: #{tpu_custom_call.1} parent=11 // pred_fallthru
          _
        // Predicated region
        $region29: #{tpu_custom_call.1} parent=11 // pred_check
          %p321 = pneg %p152
        $region30: #{tpu_custom_call.1} parent=11 // pred_check_branch
          %323 = sbr.rel (%p321) target = $region32
        $region31: #{tpu_custom_call.1} parent=11 // pred_region
          _
        $region32: #{tpu_custom_call.1} parent=11 // pred_fallthru
          _
        // Predicated region
        $region33: #{tpu_custom_call.1} parent=11 // pred_check
          %p324 = pneg %p173
        $region34: #{tpu_custom_call.1} parent=11 // pred_check_branch
          %326 = sbr.rel (%p324) target = $region36
        $region35: #{tpu_custom_call.1} parent=11 // pred_region
          _
        $region36: #{tpu_custom_call.1} parent=11 // pred_fallthru
          _
        // Predicated region
        $region37: #{tpu_custom_call.1} parent=11 // pred_check
          %p327 = pneg %p194
        $region38: #{tpu_custom_call.1} parent=11 // pred_check_branch
          %329 = sbr.rel (%p327) target = $region40
        $region39: #{tpu_custom_call.1} parent=11 // pred_region
          _
        $region40: #{tpu_custom_call.1} parent=11 // pred_fallthru
          _
        // Predicated region
        $region41: #{tpu_custom_call.1} parent=11 // pred_check
          %p330 = pneg %p215
        $region42: #{tpu_custom_call.1} parent=11 // pred_check_branch
          %332 = sbr.rel (%p330) target = $region44
        $region43: #{tpu_custom_call.1} parent=11 // pred_region
          _
        $region44: #{tpu_custom_call.1} parent=11 // pred_fallthru
          _
        // Predicated region
        $region45: #{tpu_custom_call.1} parent=11 // pred_check
          %p333 = pneg %p236
        $region46: #{tpu_custom_call.1} parent=11 // pred_check_branch
          %335 = sbr.rel (%p333) target = $region48
        $region47: #{tpu_custom_call.1} parent=11 // pred_region
          _
        $region48: #{tpu_custom_call.1} parent=11 // pred_fallthru
          _
        // Predicated region
        $region49: #{tpu_custom_call.1} parent=11 // pred_check
          %p336 = pneg %p257
        $region50: #{tpu_custom_call.1} parent=11 // pred_check_branch
          %338 = sbr.rel (%p336) target = $region52
        $region51: #{tpu_custom_call.1} parent=11 // pred_region
          _
        $region52: #{tpu_custom_call.1} parent=11 // pred_fallthru
          _
      $region12: #{tpu_custom_call.1} parent=5 // pred_fallthru
        _
      %p339 = scmp.lt.s32.totalorder %s21, 2
      // Predicated region
      $region53: #{tpu_custom_call.1} parent=5 // pred_check
        %p340 = pneg %p339
      $region54: #{tpu_custom_call.1} parent=5 // pred_check_branch
        %342 = sbr.rel (%p340) target = $region56
      $region55: #{tpu_custom_call.1} parent=5 // pred_region
        // Predicated region
        $region57: #{tpu_custom_call.1} parent=55 // pred_check
          %p343 = pneg %p41
        $region58: #{tpu_custom_call.1} parent=55 // pred_check_branch
          %345 = sbr.rel (%p343) target = $region60
        $region59: #{tpu_custom_call.1} parent=55 // pred_region
          %s346 = smul.u32 4, %s21
          %p347 = scmp.lt.s32.totalorder %s346, 7
          %s348 = scalar_select %p347, %s346, 7
          %s349 = smul.addr %s348, 8
          %s350 = scalar_lea.vmem %s0, %s349
          %s351 = smul.u32 4, %s21
        $region60: #{tpu_custom_call.1} parent=55 // pred_fallthru
          _
      $region56: #{tpu_custom_call.1} parent=5 // pred_fallthru
        _
      %p352 = scmp.le.s32.totalorder 1, %s21
      %p353 = scmp.lt.s32.totalorder %s21, 3
      %p354 = pnand %p352, %p353
      %p355 = pneg %p354
      // Predicated region
      $region61: #{tpu_custom_call.1} parent=5 // pred_check
        _
      $region62: #{tpu_custom_call.1} parent=5 // pred_check_branch
        %357 = sbr.rel (%p354) target = $region64
      $region63: #{tpu_custom_call.1} parent=5 // pred_region
        %s358 = ssub.s32 %s21, 1
        // Predicated region
        $region65: #{tpu_custom_call.1} parent=63 // pred_check
          %p359 = pneg %p110
        $region66: #{tpu_custom_call.1} parent=63 // pred_check_branch
          %361 = sbr.rel (%p359) target = $region68
        $region67: #{tpu_custom_call.1} parent=63 // pred_region
          %363 = dma.done [#allocation3], 18432
        $region68: #{tpu_custom_call.1} parent=63 // pred_fallthru
          _
        %s364 = smul.u32 4, %s26
        %p365 = scmp.lt.s32.totalorder %s364, 7
        %s366 = scalar_select %p365, %s364, 7
        %s367 = smul.addr %s366, 8
        %s368 = scalar_lea.vmem %s0, %s367
        %p369 = pneg %p47
        %p370 = pneg %p44
        %p371 = pneg %p68
        %p372 = pneg %p65
        %p373 = pneg %p89
        %p374 = pneg %p86
        %p375 = pneg %p110
        %p376 = pneg %p107
        %p377 = pneg %p131
        %p378 = pneg %p128
        %p379 = pneg %p152
        %p380 = pneg %p149
        %p381 = pneg %p173
        %p382 = pneg %p170
        %p383 = pneg %p194
        %p384 = pneg %p191
        %p385 = pneg %p215
        %p386 = pneg %p212
        %p387 = pneg %p236
        %p388 = pneg %p233
        %p389 = pneg %p257
        %p390 = pneg %p254
        %p391 = pneg %p283
        %p392 = pneg %p280
        %s393 = sand.u32 %s270, 1
        %s394 = scalar_lea.sflag [#allocation4], %s393
        %s395 = sand.u32 %s270, 1
        %s396 = smul.addr %s395, 32
        %s397 = scalar_lea.vmem [#allocation5], %s396
        %s398 = smul.u32 4, %s26
        %p399 = scmp.lt.s32.totalorder %s398, 7
        %s400 = scalar_select %p399, %s398, 7
        %s401 = smul.addr %s400, 8
        %s402 = scalar_lea.vmem %s0, %s401
        %s403 = smul.u32 4, %s26
        %s404 = smul.u32 4, %s26
        %v406 = vld [vmem:[%s402] sm:$0xff]
        %v407 = vld [vmem:[%s402 + $0x8] sm:$0xff]
        %v408 = vld [vmem:[%s402 + $0x10] sm:$0xff]
        %v409 = vld [vmem:[%s402 + $0x18] sm:$0xff]
        %v410 = vld [vmem:[%s1] sm:$0xf]
        %v411 = vld [vmem:[%s1 + $0x4] sm:$0xf]
        %v412 = vld [vmem:[%s1 + $0x8] sm:$0xf]
        %v413 = vld [vmem:[%s1 + $0xc] sm:$0xf]
        %v414 = vpack.c.bf16 %v406, %v406
        %v415 = vpack.c.bf16 %v407, %v407
        %v416 = vpack.c.bf16 %v408, %v408
        %v417 = vpack.c.bf16 %v409, %v409
        %v418 = vld [vmem:[%s2] sm:$0xff]
        %v419 = vld [vmem:[%s2 + $0x8] sm:$0xff]
        %v420 = vld [vmem:[%s2 + $0x10] sm:$0xff]
        %v421 = vld [vmem:[%s2 + $0x18] sm:$0xff]
        %423 = vset.pattern.permute.xlu0 0
        %424 = vperm.xlu0 %423, %v418
        %v425 = vpop.permute.xlu0 %424
        %428 = vset.pattern.permute.xlu0 0
        %429 = vperm.xlu0 %428, %v419
        %v430 = vpop.permute.xlu0 %429
        %433 = vset.pattern.permute.xlu0 0
        %434 = vperm.xlu0 %433, %v420
        %v435 = vpop.permute.xlu0 %434
        %438 = vset.pattern.permute.xlu0 0
        %439 = vperm.xlu0 %438, %v421
        %v440 = vpop.permute.xlu0 %439
        %v446 = vunpack.c.l.b16 %v410
        %v447 = vunpack.c.l.b16 %v411
        %v448 = vunpack.c.l.b16 %v412
        %v449 = vunpack.c.l.b16 %v413
        %v450 = vpack.c.b16 %v447, %v446
        %v451 = vpack.c.b16 %v449, %v448
        %vm452 = vcmask 64512
        %v454 = vsel %vm452, %v450, 0
        %v457 = vsel %vm452, %v451, 0
        %vm459 = vcmask 1043456
        %v461 = vsel %vm459, %v414, 0
        %v464 = vsel %vm459, %v415, 0
        %v467 = vsel %vm459, %v416, 0
        %v470 = vsel %vm459, %v417, 0
        %472 = vmatpush.bf16.msra.mxu0 0
        %473 = vmatpush.bf16.msra.mxu0 0
        %474 = vmatpush.bf16.msra.mxu0 0
        %475 = vmatpush.bf16.msra.mxu0 0
        %476 = vmatpush.bf16.msra.mxu0 0
        %477 = vmatpush.bf16.msra.mxu0 0
        %478 = vmatpush.bf16.msra.mxu0 0
        %479 = vmatpush.bf16.msra.mxu0 %v461
        %480 = vmatmul.bf16.gmra.mxu0 %v454
        %v481 = vpop.f32.mrf.mxu0
        %v482 = vadd.f32 %v425, %v481
        %v483 = vpop.f32.mrf.mxu0
        %v484 = vadd.f32 %v430, %v483
        %485 = vmatmul.bf16.gmra.mxu0 %v457
        %v486 = vpop.f32.mrf.mxu0
        %v487 = vadd.f32 %v435, %v486
        %v488 = vpop.f32.mrf.mxu0
        %v489 = vadd.f32 %v440, %v488
        %490 = vdwg.mxu0
        %491 = vmatpush.bf16.msra.mxu0 0
        %492 = vmatpush.bf16.msra.mxu0 0
        %493 = vmatpush.bf16.msra.mxu0 0
        %494 = vmatpush.bf16.msra.mxu0 0
        %495 = vmatpush.bf16.msra.mxu0 0
        %496 = vmatpush.bf16.msra.mxu0 0
        %497 = vmatpush.bf16.msra.mxu0 0
        %498 = vmatpush.bf16.msra.mxu0 %v464
        %499 = vmatmul.bf16.gmra.mxu0 %v454
        %v500 = vpop.f32.mrf.mxu0
        %v501 = vadd.f32 %v425, %v500
        %v502 = vpop.f32.mrf.mxu0
        %v503 = vadd.f32 %v430, %v502
        %504 = vmatmul.bf16.gmra.mxu0 %v457
        %v505 = vpop.f32.mrf.mxu0
        %v506 = vadd.f32 %v435, %v505
        %v507 = vpop.f32.mrf.mxu0
        %v508 = vadd.f32 %v440, %v507
        %509 = vdwg.mxu0
        %510 = vmatpush.bf16.msra.mxu0 0
        %511 = vmatpush.bf16.msra.mxu0 0
        %512 = vmatpush.bf16.msra.mxu0 0
        %513 = vmatpush.bf16.msra.mxu0 0
        %514 = vmatpush.bf16.msra.mxu0 0
        %515 = vmatpush.bf16.msra.mxu0 0
        %516 = vmatpush.bf16.msra.mxu0 0
        %517 = vmatpush.bf16.msra.mxu0 %v467
        %518 = vmatmul.bf16.gmra.mxu0 %v454
        %v519 = vpop.f32.mrf.mxu0
        %v520 = vadd.f32 %v425, %v519
        %v521 = vpop.f32.mrf.mxu0
        %v522 = vadd.f32 %v430, %v521
        %523 = vmatmul.bf16.gmra.mxu0 %v457
        %v524 = vpop.f32.mrf.mxu0
        %v525 = vadd.f32 %v435, %v524
        %v526 = vpop.f32.mrf.mxu0
        %v527 = vadd.f32 %v440, %v526
        %528 = vdwg.mxu0
        %529 = vmatpush.bf16.msra.mxu0 0
        %530 = vmatpush.bf16.msra.mxu0 0
        %531 = vmatpush.bf16.msra.mxu0 0
        %532 = vmatpush.bf16.msra.mxu0 0
        %533 = vmatpush.bf16.msra.mxu0 0
        %534 = vmatpush.bf16.msra.mxu0 0
        %535 = vmatpush.bf16.msra.mxu0 0
        %536 = vmatpush.bf16.msra.mxu0 %v470
        %537 = vmatmul.bf16.gmra.mxu0 %v454
        %v538 = vpop.f32.mrf.mxu0
        %v539 = vadd.f32 %v425, %v538
        %v540 = vpop.f32.mrf.mxu0
        %v541 = vadd.f32 %v430, %v540
        %542 = vmatmul.bf16.gmra.mxu0 %v457
        %v543 = vpop.f32.mrf.mxu0
        %v544 = vadd.f32 %v435, %v543
        %v545 = vpop.f32.mrf.mxu0
        %v546 = vadd.f32 %v440, %v545
        %547 = vdwg.mxu0
        %v548 = vsub.f32 0.0, %v482
        %v549 = vsub.f32 0.0, %v501
        %v550 = vsub.f32 0.0, %v520
        %v551 = vsub.f32 0.0, %v539
        %v552 = vsub.f32 0.0, %v484
        %v553 = vsub.f32 0.0, %v503
        %v554 = vsub.f32 0.0, %v522
        %v555 = vsub.f32 0.0, %v541
        %v556 = vsub.f32 0.0, %v487
        %v557 = vsub.f32 0.0, %v506
        %v558 = vsub.f32 0.0, %v525
        %v559 = vsub.f32 0.0, %v544
        %v560 = vsub.f32 0.0, %v489
        %v561 = vsub.f32 0.0, %v508
        %v562 = vsub.f32 0.0, %v527
        %v563 = vsub.f32 0.0, %v546
        %v564 = vmul.f32 %v548, 1.442695
        %v565 = vpow.pop %v564
        %v566 = vmul.f32 %v549, 1.442695
        %v567 = vpow.pop %v566
        %v568 = vmul.f32 %v550, 1.442695
        %v569 = vpow.pop %v568
        %v570 = vmul.f32 %v551, 1.442695
        %v571 = vpow.pop %v570
        %v572 = vmul.f32 %v552, 1.442695
        %v573 = vpow.pop %v572
        %v574 = vmul.f32 %v553, 1.442695
        %v575 = vpow.pop %v574
        %v576 = vmul.f32 %v554, 1.442695
        %v577 = vpow.pop %v576
        %v578 = vmul.f32 %v555, 1.442695
        %v579 = vpow.pop %v578
        %v580 = vmul.f32 %v556, 1.442695
        %v581 = vpow.pop %v580
        %v582 = vmul.f32 %v557, 1.442695
        %v583 = vpow.pop %v582
        %v584 = vmul.f32 %v558, 1.442695
        %v585 = vpow.pop %v584
        %v586 = vmul.f32 %v559, 1.442695
        %v587 = vpow.pop %v586
        %v588 = vmul.f32 %v560, 1.442695
        %v589 = vpow.pop %v588
        %v590 = vmul.f32 %v561, 1.442695
        %v591 = vpow.pop %v590
        %v592 = vmul.f32 %v562, 1.442695
        %v593 = vpow.pop %v592
        %v594 = vmul.f32 %v563, 1.442695
        %v595 = vpow.pop %v594
        %v596 = vadd.f32 %v565, 1.0
        %v597 = vadd.f32 %v567, 1.0
        %v598 = vadd.f32 %v569, 1.0
        %v599 = vadd.f32 %v571, 1.0
        %v600 = vadd.f32 %v573, 1.0
        %v601 = vadd.f32 %v575, 1.0
        %v602 = vadd.f32 %v577, 1.0
        %v603 = vadd.f32 %v579, 1.0
        %v604 = vadd.f32 %v581, 1.0
        %v605 = vadd.f32 %v583, 1.0
        %v606 = vadd.f32 %v585, 1.0
        %v607 = vadd.f32 %v587, 1.0
        %v608 = vadd.f32 %v589, 1.0
        %v609 = vadd.f32 %v591, 1.0
        %v610 = vadd.f32 %v593, 1.0
        %v611 = vadd.f32 %v595, 1.0
        %v612 = vrcp.pop %v596
        %v613 = vrcp.pop %v597
        %v614 = vrcp.pop %v598
        %v615 = vrcp.pop %v599
        %v616 = vrcp.pop %v600
        %v617 = vrcp.pop %v601
        %v618 = vrcp.pop %v602
        %v619 = vrcp.pop %v603
        %v620 = vrcp.pop %v604
        %v621 = vrcp.pop %v605
        %v622 = vrcp.pop %v606
        %v623 = vrcp.pop %v607
        %v624 = vrcp.pop %v608
        %v625 = vrcp.pop %v609
        %v626 = vrcp.pop %v610
        %v627 = vrcp.pop %v611
        %v628 = vmul.f32 %v482, %v612
        %v629 = vmul.f32 %v501, %v613
        %v630 = vmul.f32 %v520, %v614
        %v631 = vmul.f32 %v539, %v615
        %v632 = vmul.f32 %v484, %v616
        %v633 = vmul.f32 %v503, %v617
        %v634 = vmul.f32 %v522, %v618
        %v635 = vmul.f32 %v541, %v619
        %v636 = vmul.f32 %v487, %v620
        %v637 = vmul.f32 %v506, %v621
        %v638 = vmul.f32 %v525, %v622
        %v639 = vmul.f32 %v544, %v623
        %v640 = vmul.f32 %v489, %v624
        %v641 = vmul.f32 %v508, %v625
        %v642 = vmul.f32 %v527, %v626
        %v643 = vmul.f32 %v546, %v627
        %s644 = scalar_lea.vmem [#allocation2], 512
        %v645 = vld [vmem:[%s644] sm:$0xff]
        %v646 = vld [vmem:[%s644 + $0x8] sm:$0xff]
        %v647 = vld [vmem:[%s644 + $0x10] sm:$0xff]
        %v648 = vld [vmem:[%s644 + $0x18] sm:$0xff]
        %v649 = vld [vmem:[%s644 + $0x20] sm:$0xff]
        %v650 = vld [vmem:[%s644 + $0x28] sm:$0xff]
        %v651 = vld [vmem:[%s644 + $0x30] sm:$0xff]
        %v652 = vld [vmem:[%s644 + $0x38] sm:$0xff]
        %v653 = vld [vmem:[%s644 + $0x40] sm:$0xff]
        %v654 = vld [vmem:[%s644 + $0x48] sm:$0xff]
        %v655 = vld [vmem:[%s644 + $0x50] sm:$0xff]
        %v656 = vld [vmem:[%s644 + $0x58] sm:$0xff]
        %v657 = vld [vmem:[%s644 + $0x60] sm:$0xff]
        %v658 = vld [vmem:[%s644 + $0x68] sm:$0xff]
        %v659 = vld [vmem:[%s644 + $0x70] sm:$0xff]
        %v660 = vld [vmem:[%s644 + $0x78] sm:$0xff]
        %v661 = vmul.f32 %v645, %v628
        %v662 = vmul.f32 %v646, %v629
        %v663 = vmul.f32 %v647, %v630
        %v664 = vmul.f32 %v648, %v631
        %v665 = vmul.f32 %v649, %v632
        %v666 = vmul.f32 %v650, %v633
        %v667 = vmul.f32 %v651, %v634
        %v668 = vmul.f32 %v652, %v635
        %v669 = vmul.f32 %v653, %v636
        %v670 = vmul.f32 %v654, %v637
        %v671 = vmul.f32 %v655, %v638
        %v672 = vmul.f32 %v656, %v639
        %v673 = vmul.f32 %v657, %v640
        %v674 = vmul.f32 %v658, %v641
        %v675 = vmul.f32 %v659, %v642
        %v676 = vmul.f32 %v660, %v643
        %v677 = vld [vmem:[#allocation2] sm:$0xff]
        %v678 = vld [vmem:[#allocation2 + $0x8] sm:$0xff]
        %v679 = vld [vmem:[#allocation2 + $0x10] sm:$0xff]
        %v680 = vld [vmem:[#allocation2 + $0x18] sm:$0xff]
        %v681 = vld [vmem:[#allocation2 + $0x20] sm:$0xff]
        %v682 = vld [vmem:[#allocation2 + $0x28] sm:$0xff]
        %v683 = vld [vmem:[#allocation2 + $0x30] sm:$0xff]
        %v684 = vld [vmem:[#allocation2 + $0x38] sm:$0xff]
        %v685 = vld [vmem:[#allocation2 + $0x40] sm:$0xff]
        %v686 = vld [vmem:[#allocation2 + $0x48] sm:$0xff]
        %v687 = vld [vmem:[#allocation2 + $0x50] sm:$0xff]
        %v688 = vld [vmem:[#allocation2 + $0x58] sm:$0xff]
        %v689 = vld [vmem:[#allocation2 + $0x60] sm:$0xff]
        %v690 = vld [vmem:[#allocation2 + $0x68] sm:$0xff]
        %v691 = vld [vmem:[#allocation2 + $0x70] sm:$0xff]
        %v692 = vld [vmem:[#allocation2 + $0x78] sm:$0xff]
        %693 = vrot.lane.b32.xlu0 %v628, 17
        %v694 = vpop.permute.xlu0 %693
        %695 = vrot.lane.b32.xlu0 %v632, 17
        %v696 = vpop.permute.xlu0 %695
        %697 = vrot.lane.b32.xlu0 %v636, 17
        %v698 = vpop.permute.xlu0 %697
        %699 = vrot.lane.b32.xlu0 %v640, 17
        %v700 = vpop.permute.xlu0 %699
        %701 = vrot.lane.b32.xlu0 %v629, 17
        %v702 = vpop.permute.xlu0 %701
        %703 = vrot.lane.b32.xlu0 %v633, 17
        %v704 = vpop.permute.xlu0 %703
        %705 = vrot.lane.b32.xlu0 %v637, 17
        %v706 = vpop.permute.xlu0 %705
        %707 = vrot.lane.b32.xlu0 %v641, 17
        %v708 = vpop.permute.xlu0 %707
        %709 = vrot.lane.b32.xlu0 %v630, 17
        %v710 = vpop.permute.xlu0 %709
        %711 = vrot.lane.b32.xlu0 %v634, 17
        %v712 = vpop.permute.xlu0 %711
        %713 = vrot.lane.b32.xlu0 %v638, 17
        %v714 = vpop.permute.xlu0 %713
        %715 = vrot.lane.b32.xlu0 %v642, 17
        %v716 = vpop.permute.xlu0 %715
        %717 = vrot.lane.b32.xlu0 %v631, 17
        %v718 = vpop.permute.xlu0 %717
        %719 = vrot.lane.b32.xlu0 %v635, 17
        %v720 = vpop.permute.xlu0 %719
        %721 = vrot.lane.b32.xlu0 %v639, 17
        %v722 = vpop.permute.xlu0 %721
        %723 = vrot.lane.b32.xlu0 %v643, 17
        %v724 = vpop.permute.xlu0 %723
        %v725 = vlaneseq
        %v726 = vand.u32 %v725, 127
        %vm727 = vcmp.lt.s32.totalorder %v726, 17
        %v728 = vsel %vm727, %v710, %v718
        %v729 = vsel %vm727, %v712, %v720
        %v730 = vsel %vm727, %v714, %v722
        %v731 = vsel %vm727, %v716, %v724
        %v732 = vsel %vm727, %v702, %v710
        %v733 = vsel %vm727, %v704, %v712
        %v734 = vsel %vm727, %v706, %v714
        %v735 = vsel %vm727, %v708, %v716
        %v736 = vsel %vm727, %v694, %v702
        %v737 = vsel %vm727, %v696, %v704
        %v738 = vsel %vm727, %v698, %v706
        %v739 = vsel %vm727, %v700, %v708
        %v740 = vsel %vm727, %v718, %v694
        %v741 = vsel %vm727, %v720, %v696
        %v742 = vsel %vm727, %v722, %v698
        %v743 = vsel %vm727, %v724, %v700
        %v744 = vmul.f32 %v677, %v740
        %v745 = vmul.f32 %v678, %v736
        %v746 = vmul.f32 %v679, %v732
        %v747 = vmul.f32 %v680, %v728
        %v748 = vmul.f32 %v681, %v741
        %v749 = vmul.f32 %v682, %v737
        %v750 = vmul.f32 %v683, %v733
        %v751 = vmul.f32 %v684, %v729
        %v752 = vmul.f32 %v685, %v742
        %v753 = vmul.f32 %v686, %v738
        %v754 = vmul.f32 %v687, %v734
        %v755 = vmul.f32 %v688, %v730
        %v756 = vmul.f32 %v689, %v743
        %v757 = vmul.f32 %v690, %v739
        %v758 = vmul.f32 %v691, %v735
        %v759 = vmul.f32 %v692, %v731
        %v760 = vadd.f32 %v661, %v744
        %v761 = vadd.f32 %v662, %v745
        %v762 = vadd.f32 %v663, %v746
        %v763 = vadd.f32 %v664, %v747
        %v764 = vadd.f32 %v665, %v748
        %v765 = vadd.f32 %v666, %v749
        %v766 = vadd.f32 %v667, %v750
        %v767 = vadd.f32 %v668, %v751
        %v768 = vadd.f32 %v669, %v752
        %v769 = vadd.f32 %v670, %v753
        %v770 = vadd.f32 %v671, %v754
        %v771 = vadd.f32 %v672, %v755
        %v772 = vadd.f32 %v673, %v756
        %v773 = vadd.f32 %v674, %v757
        %v774 = vadd.f32 %v675, %v758
        %v775 = vadd.f32 %v676, %v759
        %s776 = scalar_lea.vmem [#allocation2], 128
        %v777 = vld [vmem:[%s776] sm:$0xff]
        %v778 = vld [vmem:[%s776 + $0x8] sm:$0xff]
        %v779 = vld [vmem:[%s776 + $0x10] sm:$0xff]
        %v780 = vld [vmem:[%s776 + $0x18] sm:$0xff]
        %v781 = vld [vmem:[%s776 + $0x20] sm:$0xff]
        %v782 = vld [vmem:[%s776 + $0x28] sm:$0xff]
        %v783 = vld [vmem:[%s776 + $0x30] sm:$0xff]
        %v784 = vld [vmem:[%s776 + $0x38] sm:$0xff]
        %v785 = vld [vmem:[%s776 + $0x40] sm:$0xff]
        %v786 = vld [vmem:[%s776 + $0x48] sm:$0xff]
        %v787 = vld [vmem:[%s776 + $0x50] sm:$0xff]
        %v788 = vld [vmem:[%s776 + $0x58] sm:$0xff]
        %v789 = vld [vmem:[%s776 + $0x60] sm:$0xff]
        %v790 = vld [vmem:[%s776 + $0x68] sm:$0xff]
        %v791 = vld [vmem:[%s776 + $0x70] sm:$0xff]
        %v792 = vld [vmem:[%s776 + $0x78] sm:$0xff]
        %793 = vrot.lane.b32.xlu0 %v628, 16
        %v794 = vpop.permute.xlu0 %793
        %795 = vrot.lane.b32.xlu0 %v632, 16
        %v796 = vpop.permute.xlu0 %795
        %797 = vrot.lane.b32.xlu0 %v636, 16
        %v798 = vpop.permute.xlu0 %797
        %799 = vrot.lane.b32.xlu0 %v640, 16
        %v800 = vpop.permute.xlu0 %799
        %801 = vrot.lane.b32.xlu0 %v629, 16
        %v802 = vpop.permute.xlu0 %801
        %803 = vrot.lane.b32.xlu0 %v633, 16
        %v804 = vpop.permute.xlu0 %803
        %805 = vrot.lane.b32.xlu0 %v637, 16
        %v806 = vpop.permute.xlu0 %805
        %807 = vrot.lane.b32.xlu0 %v641, 16
        %v808 = vpop.permute.xlu0 %807
        %809 = vrot.lane.b32.xlu0 %v630, 16
        %v810 = vpop.permute.xlu0 %809
        %811 = vrot.lane.b32.xlu0 %v634, 16
        %v812 = vpop.permute.xlu0 %811
        %813 = vrot.lane.b32.xlu0 %v638, 16
        %v814 = vpop.permute.xlu0 %813
        %815 = vrot.lane.b32.xlu0 %v642, 16
        %v816 = vpop.permute.xlu0 %815
        %817 = vrot.lane.b32.xlu0 %v631, 16
        %v818 = vpop.permute.xlu0 %817
        %819 = vrot.lane.b32.xlu0 %v635, 16
        %v820 = vpop.permute.xlu0 %819
        %821 = vrot.lane.b32.xlu0 %v639, 16
        %v822 = vpop.permute.xlu0 %821
        %823 = vrot.lane.b32.xlu0 %v643, 16
        %v824 = vpop.permute.xlu0 %823
        %vm825 = vcmp.lt.s32.totalorder %v726, 16
        %v826 = vsel %vm825, %v810, %v818
        %v827 = vsel %vm825, %v812, %v820
        %v828 = vsel %vm825, %v814, %v822
        %v829 = vsel %vm825, %v816, %v824
        %v830 = vsel %vm825, %v802, %v810
        %v831 = vsel %vm825, %v804, %v812
        %v832 = vsel %vm825, %v806, %v814
        %v833 = vsel %vm825, %v808, %v816
        %v834 = vsel %vm825, %v794, %v802
        %v835 = vsel %vm825, %v796, %v804
        %v836 = vsel %vm825, %v798, %v806
        %v837 = vsel %vm825, %v800, %v808
        %v838 = vsel %vm825, %v818, %v794
        %v839 = vsel %vm825, %v820, %v796
        %v840 = vsel %vm825, %v822, %v798
        %v841 = vsel %vm825, %v824, %v800
        %v842 = vmul.f32 %v777, %v838
        %v843 = vmul.f32 %v778, %v834
        %v844 = vmul.f32 %v779, %v830
        %v845 = vmul.f32 %v780, %v826
        %v846 = vmul.f32 %v781, %v839
        %v847 = vmul.f32 %v782, %v835
        %v848 = vmul.f32 %v783, %v831
        %v849 = vmul.f32 %v784, %v827
        %v850 = vmul.f32 %v785, %v840
        %v851 = vmul.f32 %v786, %v836
        %v852 = vmul.f32 %v787, %v832
        %v853 = vmul.f32 %v788, %v828
        %v854 = vmul.f32 %v789, %v841
        %v855 = vmul.f32 %v790, %v837
        %v856 = vmul.f32 %v791, %v833
        %v857 = vmul.f32 %v792, %v829
        %v858 = vadd.f32 %v760, %v842
        %v859 = vadd.f32 %v761, %v843
        %v860 = vadd.f32 %v762, %v844
        %v861 = vadd.f32 %v763, %v845
        %v862 = vadd.f32 %v764, %v846
        %v863 = vadd.f32 %v765, %v847
        %v864 = vadd.f32 %v766, %v848
        %v865 = vadd.f32 %v767, %v849
        %v866 = vadd.f32 %v768, %v850
        %v867 = vadd.f32 %v769, %v851
        %v868 = vadd.f32 %v770, %v852
        %v869 = vadd.f32 %v771, %v853
        %v870 = vadd.f32 %v772, %v854
        %v871 = vadd.f32 %v773, %v855
        %v872 = vadd.f32 %v774, %v856
        %v873 = vadd.f32 %v775, %v857
        %s874 = scalar_lea.vmem [#allocation2], 256
        %v875 = vld [vmem:[%s874] sm:$0xff]
        %v876 = vld [vmem:[%s874 + $0x8] sm:$0xff]
        %v877 = vld [vmem:[%s874 + $0x10] sm:$0xff]
        %v878 = vld [vmem:[%s874 + $0x18] sm:$0xff]
        %v879 = vld [vmem:[%s874 + $0x20] sm:$0xff]
        %v880 = vld [vmem:[%s874 + $0x28] sm:$0xff]
        %v881 = vld [vmem:[%s874 + $0x30] sm:$0xff]
        %v882 = vld [vmem:[%s874 + $0x38] sm:$0xff]
        %v883 = vld [vmem:[%s874 + $0x40] sm:$0xff]
        %v884 = vld [vmem:[%s874 + $0x48] sm:$0xff]
        %v885 = vld [vmem:[%s874 + $0x50] sm:$0xff]
        %v886 = vld [vmem:[%s874 + $0x58] sm:$0xff]
        %v887 = vld [vmem:[%s874 + $0x60] sm:$0xff]
        %v888 = vld [vmem:[%s874 + $0x68] sm:$0xff]
        %v889 = vld [vmem:[%s874 + $0x70] sm:$0xff]
        %v890 = vld [vmem:[%s874 + $0x78] sm:$0xff]
        %891 = vrot.lane.b32.xlu0 %v628, 15
        %v892 = vpop.permute.xlu0 %891
        %893 = vrot.lane.b32.xlu0 %v632, 15
        %v894 = vpop.permute.xlu0 %893
        %895 = vrot.lane.b32.xlu0 %v636, 15
        %v896 = vpop.permute.xlu0 %895
        %897 = vrot.lane.b32.xlu0 %v640, 15
        %v898 = vpop.permute.xlu0 %897
        %899 = vrot.lane.b32.xlu0 %v629, 15
        %v900 = vpop.permute.xlu0 %899
        %901 = vrot.lane.b32.xlu0 %v633, 15
        %v902 = vpop.permute.xlu0 %901
        %903 = vrot.lane.b32.xlu0 %v637, 15
        %v904 = vpop.permute.xlu0 %903
        %905 = vrot.lane.b32.xlu0 %v641, 15
        %v906 = vpop.permute.xlu0 %905
        %907 = vrot.lane.b32.xlu0 %v630, 15
        %v908 = vpop.permute.xlu0 %907
        %909 = vrot.lane.b32.xlu0 %v634, 15
        %v910 = vpop.permute.xlu0 %909
        %911 = vrot.lane.b32.xlu0 %v638, 15
        %v912 = vpop.permute.xlu0 %911
        %913 = vrot.lane.b32.xlu0 %v642, 15
        %v914 = vpop.permute.xlu0 %913
        %915 = vrot.lane.b32.xlu0 %v631, 15
        %v916 = vpop.permute.xlu0 %915
        %917 = vrot.lane.b32.xlu0 %v635, 15
        %v918 = vpop.permute.xlu0 %917
        %919 = vrot.lane.b32.xlu0 %v639, 15
        %v920 = vpop.permute.xlu0 %919
        %921 = vrot.lane.b32.xlu0 %v643, 15
        %v922 = vpop.permute.xlu0 %921
        %vm923 = vcmp.lt.s32.totalorder %v726, 15
        %v924 = vsel %vm923, %v908, %v916
        %v925 = vsel %vm923, %v910, %v918
        %v926 = vsel %vm923, %v912, %v920
        %v927 = vsel %vm923, %v914, %v922
        %v928 = vsel %vm923, %v900, %v908
        %v929 = vsel %vm923, %v902, %v910
        %v930 = vsel %vm923, %v904, %v912
        %v931 = vsel %vm923, %v906, %v914
        %v932 = vsel %vm923, %v892, %v900
        %v933 = vsel %vm923, %v894, %v902
        %v934 = vsel %vm923, %v896, %v904
        %v935 = vsel %vm923, %v898, %v906
        %v936 = vsel %vm923, %v916, %v892
        %v937 = vsel %vm923, %v918, %v894
        %v938 = vsel %vm923, %v920, %v896
        %v939 = vsel %vm923, %v922, %v898
        %v940 = vmul.f32 %v875, %v936
        %v941 = vmul.f32 %v876, %v932
        %v942 = vmul.f32 %v877, %v928
        %v943 = vmul.f32 %v878, %v924
        %v944 = vmul.f32 %v879, %v937
        %v945 = vmul.f32 %v880, %v933
        %v946 = vmul.f32 %v881, %v929
        %v947 = vmul.f32 %v882, %v925
        %v948 = vmul.f32 %v883, %v938
        %v949 = vmul.f32 %v884, %v934
        %v950 = vmul.f32 %v885, %v930
        %v951 = vmul.f32 %v886, %v926
        %v952 = vmul.f32 %v887, %v939
        %v953 = vmul.f32 %v888, %v935
        %v954 = vmul.f32 %v889, %v931
        %v955 = vmul.f32 %v890, %v927
        %v956 = vadd.f32 %v858, %v940
        %v957 = vadd.f32 %v859, %v941
        %v958 = vadd.f32 %v860, %v942
        %v959 = vadd.f32 %v861, %v943
        %v960 = vadd.f32 %v862, %v944
        %v961 = vadd.f32 %v863, %v945
        %v962 = vadd.f32 %v864, %v946
        %v963 = vadd.f32 %v865, %v947
        %v964 = vadd.f32 %v866, %v948
        %v965 = vadd.f32 %v867, %v949
        %v966 = vadd.f32 %v868, %v950
        %v967 = vadd.f32 %v869, %v951
        %v968 = vadd.f32 %v870, %v952
        %v969 = vadd.f32 %v871, %v953
        %v970 = vadd.f32 %v872, %v954
        %v971 = vadd.f32 %v873, %v955
        %s972 = scalar_lea.vmem [#allocation2], 384
        %v973 = vld [vmem:[%s972] sm:$0xff]
        %v974 = vld [vmem:[%s972 + $0x8] sm:$0xff]
        %v975 = vld [vmem:[%s972 + $0x10] sm:$0xff]
        %v976 = vld [vmem:[%s972 + $0x18] sm:$0xff]
        %v977 = vld [vmem:[%s972 + $0x20] sm:$0xff]
        %v978 = vld [vmem:[%s972 + $0x28] sm:$0xff]
        %v979 = vld [vmem:[%s972 + $0x30] sm:$0xff]
        %v980 = vld [vmem:[%s972 + $0x38] sm:$0xff]
        %v981 = vld [vmem:[%s972 + $0x40] sm:$0xff]
        %v982 = vld [vmem:[%s972 + $0x48] sm:$0xff]
        %v983 = vld [vmem:[%s972 + $0x50] sm:$0xff]
        %v984 = vld [vmem:[%s972 + $0x58] sm:$0xff]
        %v985 = vld [vmem:[%s972 + $0x60] sm:$0xff]
        %v986 = vld [vmem:[%s972 + $0x68] sm:$0xff]
        %v987 = vld [vmem:[%s972 + $0x70] sm:$0xff]
        %v988 = vld [vmem:[%s972 + $0x78] sm:$0xff]
        %989 = vrot.lane.b32.xlu0 %v628, 1
        %v990 = vpop.permute.xlu0 %989
        %991 = vrot.lane.b32.xlu0 %v632, 1
        %v992 = vpop.permute.xlu0 %991
        %993 = vrot.lane.b32.xlu0 %v636, 1
        %v994 = vpop.permute.xlu0 %993
        %995 = vrot.lane.b32.xlu0 %v640, 1
        %v996 = vpop.permute.xlu0 %995
        %997 = vrot.lane.b32.xlu0 %v629, 1
        %v998 = vpop.permute.xlu0 %997
        %999 = vrot.lane.b32.xlu0 %v633, 1
        %v1000 = vpop.permute.xlu0 %999
        %1001 = vrot.lane.b32.xlu0 %v637, 1
        %v1002 = vpop.permute.xlu0 %1001
        %1003 = vrot.lane.b32.xlu0 %v641, 1
        %v1004 = vpop.permute.xlu0 %1003
        %1005 = vrot.lane.b32.xlu0 %v630, 1
        %v1006 = vpop.permute.xlu0 %1005
        %1007 = vrot.lane.b32.xlu0 %v634, 1
        %v1008 = vpop.permute.xlu0 %1007
        %1009 = vrot.lane.b32.xlu0 %v638, 1
        %v1010 = vpop.permute.xlu0 %1009
        %1011 = vrot.lane.b32.xlu0 %v642, 1
        %v1012 = vpop.permute.xlu0 %1011
        %1013 = vrot.lane.b32.xlu0 %v631, 1
        %v1014 = vpop.permute.xlu0 %1013
        %1015 = vrot.lane.b32.xlu0 %v635, 1
        %v1016 = vpop.permute.xlu0 %1015
        %1017 = vrot.lane.b32.xlu0 %v639, 1
        %v1018 = vpop.permute.xlu0 %1017
        %1019 = vrot.lane.b32.xlu0 %v643, 1
        %v1020 = vpop.permute.xlu0 %1019
        %vm1021 = vcmp.lt.s32.totalorder %v726, 1
        %v1022 = vsel %vm1021, %v1006, %v1014
        %v1023 = vsel %vm1021, %v1008, %v1016
        %v1024 = vsel %vm1021, %v1010, %v1018
        %v1025 = vsel %vm1021, %v1012, %v1020
        %v1026 = vsel %vm1021, %v998, %v1006
        %v1027 = vsel %vm1021, %v1000, %v1008
        %v1028 = vsel %vm1021, %v1002, %v1010
        %v1029 = vsel %vm1021, %v1004, %v1012
        %v1030 = vsel %vm1021, %v990, %v998
        %v1031 = vsel %vm1021, %v992, %v1000
        %v1032 = vsel %vm1021, %v994, %v1002
        %v1033 = vsel %vm1021, %v996, %v1004
        %v1034 = vsel %vm1021, %v1014, %v990
        %v1035 = vsel %vm1021, %v1016, %v992
        %v1036 = vsel %vm1021, %v1018, %v994
        %v1037 = vsel %vm1021, %v1020, %v996
        %v1038 = vmul.f32 %v973, %v1034
        %v1039 = vmul.f32 %v974, %v1030
        %v1040 = vmul.f32 %v975, %v1026
        %v1041 = vmul.f32 %v976, %v1022
        %v1042 = vmul.f32 %v977, %v1035
        %v1043 = vmul.f32 %v978, %v1031
        %v1044 = vmul.f32 %v979, %v1027
        %v1045 = vmul.f32 %v980, %v1023
        %v1046 = vmul.f32 %v981, %v1036
        %v1047 = vmul.f32 %v982, %v1032
        %v1048 = vmul.f32 %v983, %v1028
        %v1049 = vmul.f32 %v984, %v1024
        %v1050 = vmul.f32 %v985, %v1037
        %v1051 = vmul.f32 %v986, %v1033
        %v1052 = vmul.f32 %v987, %v1029
        %v1053 = vmul.f32 %v988, %v1025
        %v1054 = vadd.f32 %v956, %v1038
        %v1055 = vadd.f32 %v957, %v1039
        %v1056 = vadd.f32 %v958, %v1040
        %v1057 = vadd.f32 %v959, %v1041
        %v1058 = vadd.f32 %v960, %v1042
        %v1059 = vadd.f32 %v961, %v1043
        %v1060 = vadd.f32 %v962, %v1044
        %v1061 = vadd.f32 %v963, %v1045
        %v1062 = vadd.f32 %v964, %v1046
        %v1063 = vadd.f32 %v965, %v1047
        %v1064 = vadd.f32 %v966, %v1048
        %v1065 = vadd.f32 %v967, %v1049
        %v1066 = vadd.f32 %v968, %v1050
        %v1067 = vadd.f32 %v969, %v1051
        %v1068 = vadd.f32 %v970, %v1052
        %v1069 = vadd.f32 %v971, %v1053
        %s1070 = scalar_lea.vmem [#allocation2], 640
        %v1071 = vld [vmem:[%s1070] sm:$0xff]
        %v1072 = vld [vmem:[%s1070 + $0x8] sm:$0xff]
        %v1073 = vld [vmem:[%s1070 + $0x10] sm:$0xff]
        %v1074 = vld [vmem:[%s1070 + $0x18] sm:$0xff]
        %v1075 = vld [vmem:[%s1070 + $0x20] sm:$0xff]
        %v1076 = vld [vmem:[%s1070 + $0x28] sm:$0xff]
        %v1077 = vld [vmem:[%s1070 + $0x30] sm:$0xff]
        %v1078 = vld [vmem:[%s1070 + $0x38] sm:$0xff]
        %v1079 = vld [vmem:[%s1070 + $0x40] sm:$0xff]
        %v1080 = vld [vmem:[%s1070 + $0x48] sm:$0xff]
        %v1081 = vld [vmem:[%s1070 + $0x50] sm:$0xff]
        %v1082 = vld [vmem:[%s1070 + $0x58] sm:$0xff]
        %v1083 = vld [vmem:[%s1070 + $0x60] sm:$0xff]
        %v1084 = vld [vmem:[%s1070 + $0x68] sm:$0xff]
        %v1085 = vld [vmem:[%s1070 + $0x70] sm:$0xff]
        %v1086 = vld [vmem:[%s1070 + $0x78] sm:$0xff]
        %1087 = vrot.lane.b32.xlu0 %v628, 127
        %v1088 = vpop.permute.xlu0 %1087
        %1089 = vrot.lane.b32.xlu0 %v632, 127
        %v1090 = vpop.permute.xlu0 %1089
        %1091 = vrot.lane.b32.xlu0 %v636, 127
        %v1092 = vpop.permute.xlu0 %1091
        %1093 = vrot.lane.b32.xlu0 %v640, 127
        %v1094 = vpop.permute.xlu0 %1093
        %1095 = vrot.lane.b32.xlu0 %v629, 127
        %v1096 = vpop.permute.xlu0 %1095
        %1097 = vrot.lane.b32.xlu0 %v633, 127
        %v1098 = vpop.permute.xlu0 %1097
        %1099 = vrot.lane.b32.xlu0 %v637, 127
        %v1100 = vpop.permute.xlu0 %1099
        %1101 = vrot.lane.b32.xlu0 %v641, 127
        %v1102 = vpop.permute.xlu0 %1101
        %1103 = vrot.lane.b32.xlu0 %v630, 127
        %v1104 = vpop.permute.xlu0 %1103
        %1105 = vrot.lane.b32.xlu0 %v634, 127
        %v1106 = vpop.permute.xlu0 %1105
        %1107 = vrot.lane.b32.xlu0 %v638, 127
        %v1108 = vpop.permute.xlu0 %1107
        %1109 = vrot.lane.b32.xlu0 %v642, 127
        %v1110 = vpop.permute.xlu0 %1109
        %1111 = vrot.lane.b32.xlu0 %v631, 127
        %v1112 = vpop.permute.xlu0 %1111
        %1113 = vrot.lane.b32.xlu0 %v635, 127
        %v1114 = vpop.permute.xlu0 %1113
        %1115 = vrot.lane.b32.xlu0 %v639, 127
        %v1116 = vpop.permute.xlu0 %1115
        %1117 = vrot.lane.b32.xlu0 %v643, 127
        %v1118 = vpop.permute.xlu0 %1117
        %vm1119 = vcmp.lt.s32.totalorder %v726, 127
        %v1120 = vsel %vm1119, %v1104, %v1112
        %v1121 = vsel %vm1119, %v1106, %v1114
        %v1122 = vsel %vm1119, %v1108, %v1116
        %v1123 = vsel %vm1119, %v1110, %v1118
        %v1124 = vsel %vm1119, %v1096, %v1104
        %v1125 = vsel %vm1119, %v1098, %v1106
        %v1126 = vsel %vm1119, %v1100, %v1108
        %v1127 = vsel %vm1119, %v1102, %v1110
        %v1128 = vsel %vm1119, %v1088, %v1096
        %v1129 = vsel %vm1119, %v1090, %v1098
        %v1130 = vsel %vm1119, %v1092, %v1100
        %v1131 = vsel %vm1119, %v1094, %v1102
        %v1132 = vsel %vm1119, %v1112, %v1088
        %v1133 = vsel %vm1119, %v1114, %v1090
        %v1134 = vsel %vm1119, %v1116, %v1092
        %v1135 = vsel %vm1119, %v1118, %v1094
        %v1136 = vmul.f32 %v1071, %v1128
        %v1137 = vmul.f32 %v1072, %v1124
        %v1138 = vmul.f32 %v1073, %v1120
        %v1139 = vmul.f32 %v1074, %v1132
        %v1140 = vmul.f32 %v1075, %v1129
        %v1141 = vmul.f32 %v1076, %v1125
        %v1142 = vmul.f32 %v1077, %v1121
        %v1143 = vmul.f32 %v1078, %v1133
        %v1144 = vmul.f32 %v1079, %v1130
        %v1145 = vmul.f32 %v1080, %v1126
        %v1146 = vmul.f32 %v1081, %v1122
        %v1147 = vmul.f32 %v1082, %v1134
        %v1148 = vmul.f32 %v1083, %v1131
        %v1149 = vmul.f32 %v1084, %v1127
        %v1150 = vmul.f32 %v1085, %v1123
        %v1151 = vmul.f32 %v1086, %v1135
        %v1152 = vadd.f32 %v1054, %v1136
        %v1153 = vadd.f32 %v1055, %v1137
        %v1154 = vadd.f32 %v1056, %v1138
        %v1155 = vadd.f32 %v1057, %v1139
        %v1156 = vadd.f32 %v1058, %v1140
        %v1157 = vadd.f32 %v1059, %v1141
        %v1158 = vadd.f32 %v1060, %v1142
        %v1159 = vadd.f32 %v1061, %v1143
        %v1160 = vadd.f32 %v1062, %v1144
        %v1161 = vadd.f32 %v1063, %v1145
        %v1162 = vadd.f32 %v1064, %v1146
        %v1163 = vadd.f32 %v1065, %v1147
        %v1164 = vadd.f32 %v1066, %v1148
        %v1165 = vadd.f32 %v1067, %v1149
        %v1166 = vadd.f32 %v1068, %v1150
        %v1167 = vadd.f32 %v1069, %v1151
        %s1168 = scalar_lea.vmem [#allocation2], 768
        %v1169 = vld [vmem:[%s1168] sm:$0xff]
        %v1170 = vld [vmem:[%s1168 + $0x8] sm:$0xff]
        %v1171 = vld [vmem:[%s1168 + $0x10] sm:$0xff]
        %v1172 = vld [vmem:[%s1168 + $0x18] sm:$0xff]
        %v1173 = vld [vmem:[%s1168 + $0x20] sm:$0xff]
        %v1174 = vld [vmem:[%s1168 + $0x28] sm:$0xff]
        %v1175 = vld [vmem:[%s1168 + $0x30] sm:$0xff]
        %v1176 = vld [vmem:[%s1168 + $0x38] sm:$0xff]
        %v1177 = vld [vmem:[%s1168 + $0x40] sm:$0xff]
        %v1178 = vld [vmem:[%s1168 + $0x48] sm:$0xff]
        %v1179 = vld [vmem:[%s1168 + $0x50] sm:$0xff]
        %v1180 = vld [vmem:[%s1168 + $0x58] sm:$0xff]
        %v1181 = vld [vmem:[%s1168 + $0x60] sm:$0xff]
        %v1182 = vld [vmem:[%s1168 + $0x68] sm:$0xff]
        %v1183 = vld [vmem:[%s1168 + $0x70] sm:$0xff]
        %v1184 = vld [vmem:[%s1168 + $0x78] sm:$0xff]
        %1185 = vrot.lane.b32.xlu0 %v628, 113
        %v1186 = vpop.permute.xlu0 %1185
        %1187 = vrot.lane.b32.xlu0 %v632, 113
        %v1188 = vpop.permute.xlu0 %1187
        %1189 = vrot.lane.b32.xlu0 %v636, 113
        %v1190 = vpop.permute.xlu0 %1189
        %1191 = vrot.lane.b32.xlu0 %v640, 113
        %v1192 = vpop.permute.xlu0 %1191
        %1193 = vrot.lane.b32.xlu0 %v629, 113
        %v1194 = vpop.permute.xlu0 %1193
        %1195 = vrot.lane.b32.xlu0 %v633, 113
        %v1196 = vpop.permute.xlu0 %1195
        %1197 = vrot.lane.b32.xlu0 %v637, 113
        %v1198 = vpop.permute.xlu0 %1197
        %1199 = vrot.lane.b32.xlu0 %v641, 113
        %v1200 = vpop.permute.xlu0 %1199
        %1201 = vrot.lane.b32.xlu0 %v630, 113
        %v1202 = vpop.permute.xlu0 %1201
        %1203 = vrot.lane.b32.xlu0 %v634, 113
        %v1204 = vpop.permute.xlu0 %1203
        %1205 = vrot.lane.b32.xlu0 %v638, 113
        %v1206 = vpop.permute.xlu0 %1205
        %1207 = vrot.lane.b32.xlu0 %v642, 113
        %v1208 = vpop.permute.xlu0 %1207
        %1209 = vrot.lane.b32.xlu0 %v631, 113
        %v1210 = vpop.permute.xlu0 %1209
        %1211 = vrot.lane.b32.xlu0 %v635, 113
        %v1212 = vpop.permute.xlu0 %1211
        %1213 = vrot.lane.b32.xlu0 %v639, 113
        %v1214 = vpop.permute.xlu0 %1213
        %1215 = vrot.lane.b32.xlu0 %v643, 113
        %v1216 = vpop.permute.xlu0 %1215
        %vm1217 = vcmp.lt.s32.totalorder %v726, 113
        %v1218 = vsel %vm1217, %v1202, %v1210
        %v1219 = vsel %vm1217, %v1204, %v1212
        %v1220 = vsel %vm1217, %v1206, %v1214
        %v1221 = vsel %vm1217, %v1208, %v1216
        %v1222 = vsel %vm1217, %v1194, %v1202
        %v1223 = vsel %vm1217, %v1196, %v1204
        %v1224 = vsel %vm1217, %v1198, %v1206
        %v1225 = vsel %vm1217, %v1200, %v1208
        %v1226 = vsel %vm1217, %v1186, %v1194
        %v1227 = vsel %vm1217, %v1188, %v1196
        %v1228 = vsel %vm1217, %v1190, %v1198
        %v1229 = vsel %vm1217, %v1192, %v1200
        %v1230 = vsel %vm1217, %v1210, %v1186
        %v1231 = vsel %vm1217, %v1212, %v1188
        %v1232 = vsel %vm1217, %v1214, %v1190
        %v1233 = vsel %vm1217, %v1216, %v1192
        %v1234 = vmul.f32 %v1169, %v1226
        %v1235 = vmul.f32 %v1170, %v1222
        %v1236 = vmul.f32 %v1171, %v1218
        %v1237 = vmul.f32 %v1172, %v1230
        %v1238 = vmul.f32 %v1173, %v1227
        %v1239 = vmul.f32 %v1174, %v1223
        %v1240 = vmul.f32 %v1175, %v1219
        %v1241 = vmul.f32 %v1176, %v1231
        %v1242 = vmul.f32 %v1177, %v1228
        %v1243 = vmul.f32 %v1178, %v1224
        %v1244 = vmul.f32 %v1179, %v1220
        %v1245 = vmul.f32 %v1180, %v1232
        %v1246 = vmul.f32 %v1181, %v1229
        %v1247 = vmul.f32 %v1182, %v1225
        %v1248 = vmul.f32 %v1183, %v1221
        %v1249 = vmul.f32 %v1184, %v1233
        %v1250 = vadd.f32 %v1152, %v1234
        %v1251 = vadd.f32 %v1153, %v1235
        %v1252 = vadd.f32 %v1154, %v1236
        %v1253 = vadd.f32 %v1155, %v1237
        %v1254 = vadd.f32 %v1156, %v1238
        %v1255 = vadd.f32 %v1157, %v1239
        %v1256 = vadd.f32 %v1158, %v1240
        %v1257 = vadd.f32 %v1159, %v1241
        %v1258 = vadd.f32 %v1160, %v1242
        %v1259 = vadd.f32 %v1161, %v1243
        %v1260 = vadd.f32 %v1162, %v1244
        %v1261 = vadd.f32 %v1163, %v1245
        %v1262 = vadd.f32 %v1164, %v1246
        %v1263 = vadd.f32 %v1165, %v1247
        %v1264 = vadd.f32 %v1166, %v1248
        %v1265 = vadd.f32 %v1167, %v1249
        %s1266 = scalar_lea.vmem [#allocation2], 896
        %v1267 = vld [vmem:[%s1266] sm:$0xff]
        %v1268 = vld [vmem:[%s1266 + $0x8] sm:$0xff]
        %v1269 = vld [vmem:[%s1266 + $0x10] sm:$0xff]
        %v1270 = vld [vmem:[%s1266 + $0x18] sm:$0xff]
        %v1271 = vld [vmem:[%s1266 + $0x20] sm:$0xff]
        %v1272 = vld [vmem:[%s1266 + $0x28] sm:$0xff]
        %v1273 = vld [vmem:[%s1266 + $0x30] sm:$0xff]
        %v1274 = vld [vmem:[%s1266 + $0x38] sm:$0xff]
        %v1275 = vld [vmem:[%s1266 + $0x40] sm:$0xff]
        %v1276 = vld [vmem:[%s1266 + $0x48] sm:$0xff]
        %v1277 = vld [vmem:[%s1266 + $0x50] sm:$0xff]
        %v1278 = vld [vmem:[%s1266 + $0x58] sm:$0xff]
        %v1279 = vld [vmem:[%s1266 + $0x60] sm:$0xff]
        %v1280 = vld [vmem:[%s1266 + $0x68] sm:$0xff]
        %v1281 = vld [vmem:[%s1266 + $0x70] sm:$0xff]
        %v1282 = vld [vmem:[%s1266 + $0x78] sm:$0xff]
        %1283 = vrot.lane.b32.xlu0 %v628, 112
        %v1284 = vpop.permute.xlu0 %1283
        %1285 = vrot.lane.b32.xlu0 %v632, 112
        %v1286 = vpop.permute.xlu0 %1285
        %1287 = vrot.lane.b32.xlu0 %v636, 112
        %v1288 = vpop.permute.xlu0 %1287
        %1289 = vrot.lane.b32.xlu0 %v640, 112
        %v1290 = vpop.permute.xlu0 %1289
        %1291 = vrot.lane.b32.xlu0 %v629, 112
        %v1292 = vpop.permute.xlu0 %1291
        %1293 = vrot.lane.b32.xlu0 %v633, 112
        %v1294 = vpop.permute.xlu0 %1293
        %1295 = vrot.lane.b32.xlu0 %v637, 112
        %v1296 = vpop.permute.xlu0 %1295
        %1297 = vrot.lane.b32.xlu0 %v641, 112
        %v1298 = vpop.permute.xlu0 %1297
        %1299 = vrot.lane.b32.xlu0 %v630, 112
        %v1300 = vpop.permute.xlu0 %1299
        %1301 = vrot.lane.b32.xlu0 %v634, 112
        %v1302 = vpop.permute.xlu0 %1301
        %1303 = vrot.lane.b32.xlu0 %v638, 112
        %v1304 = vpop.permute.xlu0 %1303
        %1305 = vrot.lane.b32.xlu0 %v642, 112
        %v1306 = vpop.permute.xlu0 %1305
        %1307 = vrot.lane.b32.xlu0 %v631, 112
        %v1308 = vpop.permute.xlu0 %1307
        %1309 = vrot.lane.b32.xlu0 %v635, 112
        %v1310 = vpop.permute.xlu0 %1309
        %1311 = vrot.lane.b32.xlu0 %v639, 112
        %v1312 = vpop.permute.xlu0 %1311
        %1313 = vrot.lane.b32.xlu0 %v643, 112
        %v1314 = vpop.permute.xlu0 %1313
        %vm1315 = vcmp.lt.s32.totalorder %v726, 112
        %v1316 = vsel %vm1315, %v1300, %v1308
        %v1317 = vsel %vm1315, %v1302, %v1310
        %v1318 = vsel %vm1315, %v1304, %v1312
        %v1319 = vsel %vm1315, %v1306, %v1314
        %v1320 = vsel %vm1315, %v1292, %v1300
        %v1321 = vsel %vm1315, %v1294, %v1302
        %v1322 = vsel %vm1315, %v1296, %v1304
        %v1323 = vsel %vm1315, %v1298, %v1306
        %v1324 = vsel %vm1315, %v1284, %v1292
        %v1325 = vsel %vm1315, %v1286, %v1294
        %v1326 = vsel %vm1315, %v1288, %v1296
        %v1327 = vsel %vm1315, %v1290, %v1298
        %v1328 = vsel %vm1315, %v1308, %v1284
        %v1329 = vsel %vm1315, %v1310, %v1286
        %v1330 = vsel %vm1315, %v1312, %v1288
        %v1331 = vsel %vm1315, %v1314, %v1290
        %v1332 = vmul.f32 %v1267, %v1324
        %v1333 = vmul.f32 %v1268, %v1320
        %v1334 = vmul.f32 %v1269, %v1316
        %v1335 = vmul.f32 %v1270, %v1328
        %v1336 = vmul.f32 %v1271, %v1325
        %v1337 = vmul.f32 %v1272, %v1321
        %v1338 = vmul.f32 %v1273, %v1317
        %v1339 = vmul.f32 %v1274, %v1329
        %v1340 = vmul.f32 %v1275, %v1326
        %v1341 = vmul.f32 %v1276, %v1322
        %v1342 = vmul.f32 %v1277, %v1318
        %v1343 = vmul.f32 %v1278, %v1330
        %v1344 = vmul.f32 %v1279, %v1327
        %v1345 = vmul.f32 %v1280, %v1323
        %v1346 = vmul.f32 %v1281, %v1319
        %v1347 = vmul.f32 %v1282, %v1331
        %v1348 = vadd.f32 %v1250, %v1332
        %v1349 = vadd.f32 %v1251, %v1333
        %v1350 = vadd.f32 %v1252, %v1334
        %v1351 = vadd.f32 %v1253, %v1335
        %v1352 = vadd.f32 %v1254, %v1336
        %v1353 = vadd.f32 %v1255, %v1337
        %v1354 = vadd.f32 %v1256, %v1338
        %v1355 = vadd.f32 %v1257, %v1339
        %v1356 = vadd.f32 %v1258, %v1340
        %v1357 = vadd.f32 %v1259, %v1341
        %v1358 = vadd.f32 %v1260, %v1342
        %v1359 = vadd.f32 %v1261, %v1343
        %v1360 = vadd.f32 %v1262, %v1344
        %v1361 = vadd.f32 %v1263, %v1345
        %v1362 = vadd.f32 %v1264, %v1346
        %v1363 = vadd.f32 %v1265, %v1347
        %s1364 = scalar_lea.vmem [#allocation2], 1024
        %v1365 = vld [vmem:[%s1364] sm:$0xff]
        %v1366 = vld [vmem:[%s1364 + $0x8] sm:$0xff]
        %v1367 = vld [vmem:[%s1364 + $0x10] sm:$0xff]
        %v1368 = vld [vmem:[%s1364 + $0x18] sm:$0xff]
        %v1369 = vld [vmem:[%s1364 + $0x20] sm:$0xff]
        %v1370 = vld [vmem:[%s1364 + $0x28] sm:$0xff]
        %v1371 = vld [vmem:[%s1364 + $0x30] sm:$0xff]
        %v1372 = vld [vmem:[%s1364 + $0x38] sm:$0xff]
        %v1373 = vld [vmem:[%s1364 + $0x40] sm:$0xff]
        %v1374 = vld [vmem:[%s1364 + $0x48] sm:$0xff]
        %v1375 = vld [vmem:[%s1364 + $0x50] sm:$0xff]
        %v1376 = vld [vmem:[%s1364 + $0x58] sm:$0xff]
        %v1377 = vld [vmem:[%s1364 + $0x60] sm:$0xff]
        %v1378 = vld [vmem:[%s1364 + $0x68] sm:$0xff]
        %v1379 = vld [vmem:[%s1364 + $0x70] sm:$0xff]
        %v1380 = vld [vmem:[%s1364 + $0x78] sm:$0xff]
        %1381 = vrot.lane.b32.xlu0 %v628, 111
        %v1382 = vpop.permute.xlu0 %1381
        %1383 = vrot.lane.b32.xlu0 %v632, 111
        %v1384 = vpop.permute.xlu0 %1383
        %1385 = vrot.lane.b32.xlu0 %v636, 111
        %v1386 = vpop.permute.xlu0 %1385
        %1387 = vrot.lane.b32.xlu0 %v640, 111
        %v1388 = vpop.permute.xlu0 %1387
        %1389 = vrot.lane.b32.xlu0 %v629, 111
        %v1390 = vpop.permute.xlu0 %1389
        %1391 = vrot.lane.b32.xlu0 %v633, 111
        %v1392 = vpop.permute.xlu0 %1391
        %1393 = vrot.lane.b32.xlu0 %v637, 111
        %v1394 = vpop.permute.xlu0 %1393
        %1395 = vrot.lane.b32.xlu0 %v641, 111
        %v1396 = vpop.permute.xlu0 %1395
        %1397 = vrot.lane.b32.xlu0 %v630, 111
        %v1398 = vpop.permute.xlu0 %1397
        %1399 = vrot.lane.b32.xlu0 %v634, 111
        %v1400 = vpop.permute.xlu0 %1399
        %1401 = vrot.lane.b32.xlu0 %v638, 111
        %v1402 = vpop.permute.xlu0 %1401
        %1403 = vrot.lane.b32.xlu0 %v642, 111
        %v1404 = vpop.permute.xlu0 %1403
        %1405 = vrot.lane.b32.xlu0 %v631, 111
        %v1406 = vpop.permute.xlu0 %1405
        %1407 = vrot.lane.b32.xlu0 %v635, 111
        %v1408 = vpop.permute.xlu0 %1407
        %1409 = vrot.lane.b32.xlu0 %v639, 111
        %v1410 = vpop.permute.xlu0 %1409
        %1411 = vrot.lane.b32.xlu0 %v643, 111
        %v1412 = vpop.permute.xlu0 %1411
        %vm1413 = vcmp.lt.s32.totalorder %v726, 111
        %v1414 = vsel %vm1413, %v1398, %v1406
        %v1415 = vsel %vm1413, %v1400, %v1408
        %v1416 = vsel %vm1413, %v1402, %v1410
        %v1417 = vsel %vm1413, %v1404, %v1412
        %v1418 = vsel %vm1413, %v1390, %v1398
        %v1419 = vsel %vm1413, %v1392, %v1400
        %v1420 = vsel %vm1413, %v1394, %v1402
        %v1421 = vsel %vm1413, %v1396, %v1404
        %v1422 = vsel %vm1413, %v1382, %v1390
        %v1423 = vsel %vm1413, %v1384, %v1392
        %v1424 = vsel %vm1413, %v1386, %v1394
        %v1425 = vsel %vm1413, %v1388, %v1396
        %v1426 = vsel %vm1413, %v1406, %v1382
        %v1427 = vsel %vm1413, %v1408, %v1384
        %v1428 = vsel %vm1413, %v1410, %v1386
        %v1429 = vsel %vm1413, %v1412, %v1388
        %v1430 = vmul.f32 %v1365, %v1422
        %v1431 = vmul.f32 %v1366, %v1418
        %v1432 = vmul.f32 %v1367, %v1414
        %v1433 = vmul.f32 %v1368, %v1426
        %v1434 = vmul.f32 %v1369, %v1423
        %v1435 = vmul.f32 %v1370, %v1419
        %v1436 = vmul.f32 %v1371, %v1415
        %v1437 = vmul.f32 %v1372, %v1427
        %v1438 = vmul.f32 %v1373, %v1424
        %v1439 = vmul.f32 %v1374, %v1420
        %v1440 = vmul.f32 %v1375, %v1416
        %v1441 = vmul.f32 %v1376, %v1428
        %v1442 = vmul.f32 %v1377, %v1425
        %v1443 = vmul.f32 %v1378, %v1421
        %v1444 = vmul.f32 %v1379, %v1417
        %v1445 = vmul.f32 %v1380, %v1429
        %v1446 = vadd.f32 %v1348, %v1430
        %v1447 = vadd.f32 %v1349, %v1431
        %v1448 = vadd.f32 %v1350, %v1432
        %v1449 = vadd.f32 %v1351, %v1433
        %v1450 = vadd.f32 %v1352, %v1434
        %v1451 = vadd.f32 %v1353, %v1435
        %v1452 = vadd.f32 %v1354, %v1436
        %v1453 = vadd.f32 %v1355, %v1437
        %v1454 = vadd.f32 %v1356, %v1438
        %v1455 = vadd.f32 %v1357, %v1439
        %v1456 = vadd.f32 %v1358, %v1440
        %v1457 = vadd.f32 %v1359, %v1441
        %v1458 = vadd.f32 %v1360, %v1442
        %v1459 = vadd.f32 %v1361, %v1443
        %v1460 = vadd.f32 %v1362, %v1444
        %v1461 = vadd.f32 %v1363, %v1445
        %v1462 = vld [vmem:[%s4] sm:$0xff]
        %v1463 = vld [vmem:[%s4 + $0x8] sm:$0xff]
        %v1464 = vld [vmem:[%s4 + $0x10] sm:$0xff]
        %v1465 = vld [vmem:[%s4 + $0x18] sm:$0xff]
        %1467 = vset.pattern.permute.xlu0 0
        %1468 = vperm.xlu0 %1467, %v1462
        %v1469 = vpop.permute.xlu0 %1468
        %1472 = vset.pattern.permute.xlu0 0
        %1473 = vperm.xlu0 %1472, %v1463
        %v1474 = vpop.permute.xlu0 %1473
        %1477 = vset.pattern.permute.xlu0 0
        %1478 = vperm.xlu0 %1477, %v1464
        %v1479 = vpop.permute.xlu0 %1478
        %1482 = vset.pattern.permute.xlu0 0
        %1483 = vperm.xlu0 %1482, %v1465
        %v1484 = vpop.permute.xlu0 %1483
        %v1486 = vadd.f32 %v1446, %v1469
        %v1487 = vadd.f32 %v1447, %v1469
        %v1488 = vadd.f32 %v1448, %v1469
        %v1489 = vadd.f32 %v1449, %v1469
        %v1490 = vadd.f32 %v1450, %v1474
        %v1491 = vadd.f32 %v1451, %v1474
        %v1492 = vadd.f32 %v1452, %v1474
        %v1493 = vadd.f32 %v1453, %v1474
        %v1494 = vadd.f32 %v1454, %v1479
        %v1495 = vadd.f32 %v1455, %v1479
        %v1496 = vadd.f32 %v1456, %v1479
        %v1497 = vadd.f32 %v1457, %v1479
        %v1498 = vadd.f32 %v1458, %v1484
        %v1499 = vadd.f32 %v1459, %v1484
        %v1500 = vadd.f32 %v1460, %v1484
        %v1501 = vadd.f32 %v1461, %v1484
        %v1502 = vsub.f32 0.0, %v1486
        %v1503 = vsub.f32 0.0, %v1487
        %v1504 = vsub.f32 0.0, %v1488
        %v1505 = vsub.f32 0.0, %v1489
        %v1506 = vsub.f32 0.0, %v1490
        %v1507 = vsub.f32 0.0, %v1491
        %v1508 = vsub.f32 0.0, %v1492
        %v1509 = vsub.f32 0.0, %v1493
        %v1510 = vsub.f32 0.0, %v1494
        %v1511 = vsub.f32 0.0, %v1495
        %v1512 = vsub.f32 0.0, %v1496
        %v1513 = vsub.f32 0.0, %v1497
        %v1514 = vsub.f32 0.0, %v1498
        %v1515 = vsub.f32 0.0, %v1499
        %v1516 = vsub.f32 0.0, %v1500
        %v1517 = vsub.f32 0.0, %v1501
        %v1518 = vmul.f32 %v1502, 1.442695
        %v1519 = vpow.pop %v1518
        %v1520 = vmul.f32 %v1503, 1.442695
        %v1521 = vpow.pop %v1520
        %v1522 = vmul.f32 %v1504, 1.442695
        %v1523 = vpow.pop %v1522
        %v1524 = vmul.f32 %v1505, 1.442695
        %v1525 = vpow.pop %v1524
        %v1526 = vmul.f32 %v1506, 1.442695
        %v1527 = vpow.pop %v1526
        %v1528 = vmul.f32 %v1507, 1.442695
        %v1529 = vpow.pop %v1528
        %v1530 = vmul.f32 %v1508, 1.442695
        %v1531 = vpow.pop %v1530
        %v1532 = vmul.f32 %v1509, 1.442695
        %v1533 = vpow.pop %v1532
        %v1534 = vmul.f32 %v1510, 1.442695
        %v1535 = vpow.pop %v1534
        %v1536 = vmul.f32 %v1511, 1.442695
        %v1537 = vpow.pop %v1536
        %v1538 = vmul.f32 %v1512, 1.442695
        %v1539 = vpow.pop %v1538
        %v1540 = vmul.f32 %v1513, 1.442695
        %v1541 = vpow.pop %v1540
        %v1542 = vmul.f32 %v1514, 1.442695
        %v1543 = vpow.pop %v1542
        %v1544 = vmul.f32 %v1515, 1.442695
        %v1545 = vpow.pop %v1544
        %v1546 = vmul.f32 %v1516, 1.442695
        %v1547 = vpow.pop %v1546
        %v1548 = vmul.f32 %v1517, 1.442695
        %v1549 = vpow.pop %v1548
        %v1550 = vadd.f32 %v1519, 1.0
        %v1551 = vadd.f32 %v1521, 1.0
        %v1552 = vadd.f32 %v1523, 1.0
        %v1553 = vadd.f32 %v1525, 1.0
        %v1554 = vadd.f32 %v1527, 1.0
        %v1555 = vadd.f32 %v1529, 1.0
        %v1556 = vadd.f32 %v1531, 1.0
        %v1557 = vadd.f32 %v1533, 1.0
        %v1558 = vadd.f32 %v1535, 1.0
        %v1559 = vadd.f32 %v1537, 1.0
        %v1560 = vadd.f32 %v1539, 1.0
        %v1561 = vadd.f32 %v1541, 1.0
        %v1562 = vadd.f32 %v1543, 1.0
        %v1563 = vadd.f32 %v1545, 1.0
        %v1564 = vadd.f32 %v1547, 1.0
        %v1565 = vadd.f32 %v1549, 1.0
        %v1566 = vrcp.pop %v1550
        %v1567 = vrcp.pop %v1551
        %v1568 = vrcp.pop %v1552
        %v1569 = vrcp.pop %v1553
        %v1570 = vrcp.pop %v1554
        %v1571 = vrcp.pop %v1555
        %v1572 = vrcp.pop %v1556
        %v1573 = vrcp.pop %v1557
        %v1574 = vrcp.pop %v1558
        %v1575 = vrcp.pop %v1559
        %v1576 = vrcp.pop %v1560
        %v1577 = vrcp.pop %v1561
        %v1578 = vrcp.pop %v1562
        %v1579 = vrcp.pop %v1563
        %v1580 = vrcp.pop %v1564
        %v1581 = vrcp.pop %v1565
        %v1582 = vmul.f32 %v1486, %v1566
        %v1583 = vmul.f32 %v1487, %v1567
        %v1584 = vmul.f32 %v1488, %v1568
        %v1585 = vmul.f32 %v1489, %v1569
        %v1586 = vmul.f32 %v1490, %v1570
        %v1587 = vmul.f32 %v1491, %v1571
        %v1588 = vmul.f32 %v1492, %v1572
        %v1589 = vmul.f32 %v1493, %v1573
        %v1590 = vmul.f32 %v1494, %v1574
        %v1591 = vmul.f32 %v1495, %v1575
        %v1592 = vmul.f32 %v1496, %v1576
        %v1593 = vmul.f32 %v1497, %v1577
        %v1594 = vmul.f32 %v1498, %v1578
        %v1595 = vmul.f32 %v1499, %v1579
        %v1596 = vmul.f32 %v1500, %v1580
        %v1597 = vmul.f32 %v1501, %v1581
        %v1598 = vadd.f32 %v1582, %v1583
        %1599 = vadd.xlane.f32.xlu0 %v1598
        %v1600 = vpop.xlane.xlu0 %1599
        %v1601 = vadd.f32 %v1586, %v1587
        %1602 = vadd.xlane.f32.xlu0 %v1601
        %v1603 = vpop.xlane.xlu0 %1602
        %v1604 = vadd.f32 %v1590, %v1591
        %1605 = vadd.xlane.f32.xlu0 %v1604
        %v1606 = vpop.xlane.xlu0 %1605
        %v1607 = vadd.f32 %v1594, %v1595
        %1608 = vadd.xlane.f32.xlu0 %v1607
        %v1609 = vpop.xlane.xlu0 %1608
        %v1610 = vrcp.pop 256.0
        %v1611 = vmul.f32 256.0, %v1610
        %v1612 = vsub.f32 1.0, %v1611
        %v1613 = vmul.f32 %v1610, %v1612
        %v1614 = vadd.f32 %v1610, %v1613
        %vm1615 = vweird.f32 %v1610
        %v1616 = vsel %vm1615, %v1610, %v1614
        %v1617 = vmul.f32 %v1600, %v1616
        %v1618 = vmul.f32 %v1603, %v1616
        %v1619 = vmul.f32 %v1606, %v1616
        %v1620 = vmul.f32 %v1609, %v1616
        %v1621 = vld [vmem:[%s5] sm:$0xff]
        %v1622 = vld [vmem:[%s5 + $0x8] sm:$0xff]
        %v1623 = vld [vmem:[%s5 + $0x10] sm:$0xff]
        %v1624 = vld [vmem:[%s5 + $0x18] sm:$0xff]
        %v1625 = vmul.f32 %v1621, %v1617
        %v1626 = vmul.f32 %v1622, %v1618
        %v1627 = vmul.f32 %v1623, %v1619
        %v1628 = vmul.f32 %v1624, %v1620
        %vm1629 = vcmask 15360
        %v1630 = vsel %vm1629, %v1625, 0.0
        %v1631 = vsel %vm1629, %v1626, 0.0
        %v1632 = vadd.f32 %v1630, %v1631
        %v1633 = vsel %vm1629, %v1627, 0.0
        %v1634 = vadd.f32 %v1632, %v1633
        %v1635 = vsel %vm1629, %v1628, 0.0
        %v1636 = vadd.f32 %v1634, %v1635
        %v1637 = vrot.slane %v1636, 4
        %v1638 = vadd.f32 %v1636, %v1637
        %v1639 = vrot.slane %v1638, 2
        %v1640 = vadd.f32 %v1638, %v1639
        %v1641 = vrot.slane %v1640, 1
        %v1642 = vadd.f32 %v1640, %v1641
        %v1643 = vld [vmem:[%s6] sm:$0x1]
        %v1644 = vadd.f32 %v1642, %v1643
        %v1645 = vsub.f32 0.0, %v1644
        %v1646 = vmul.f32 %v1645, 1.442695
        %v1647 = vpow.pop %v1646
        %v1648 = vadd.f32 %v1647, 1.0
        %v1649 = vrcp.pop %v1648
        %v1650 = vmul.f32 %v1644, %v1649
        %v1651 = vld [vmem:[%s7] sm:$0xff]
        %v1652 = vld [vmem:[%s7 + $0x8] sm:$0xff]
        %v1653 = vld [vmem:[%s7 + $0x10] sm:$0xff]
        %v1654 = vld [vmem:[%s7 + $0x18] sm:$0xff]
        %v1655 = vperm.slane %v1650, 0
        %v1656 = vmul.f32 %v1651, %v1655
        %v1657 = vmul.f32 %v1652, %v1655
        %v1658 = vmul.f32 %v1653, %v1655
        %v1659 = vmul.f32 %v1654, %v1655
        %v1660 = vsel %vm1629, %v1656, 0.0
        %1661 = vadd.xlane.f32.xlu0 %v1660
        %v1662 = vpop.xlane.xlu0 %1661
        %v1663 = vsel %vm1629, %v1657, 0.0
        %1664 = vadd.xlane.f32.xlu0 %v1663
        %v1665 = vpop.xlane.xlu0 %1664
        %v1666 = vsel %vm1629, %v1658, 0.0
        %1667 = vadd.xlane.f32.xlu0 %v1666
        %v1668 = vpop.xlane.xlu0 %1667
        %v1669 = vsel %vm1629, %v1659, 0.0
        %1670 = vadd.xlane.f32.xlu0 %v1669
        %v1671 = vpop.xlane.xlu0 %1670
        %v1672 = vld [vmem:[%s8] sm:$0xff]
        %v1673 = vld [vmem:[%s8 + $0x8] sm:$0xff]
        %v1674 = vld [vmem:[%s8 + $0x10] sm:$0xff]
        %v1675 = vld [vmem:[%s8 + $0x18] sm:$0xff]
        %v1676 = vadd.f32 %v1662, %v1672
        %v1677 = vadd.f32 %v1665, %v1673
        %v1678 = vadd.f32 %v1668, %v1674
        %v1679 = vadd.f32 %v1671, %v1675
        %v1680 = vsub.f32 0.0, %v1676
        %v1681 = vsub.f32 0.0, %v1677
        %v1682 = vsub.f32 0.0, %v1678
        %v1683 = vsub.f32 0.0, %v1679
        %v1684 = vmul.f32 %v1680, 1.442695
        %v1685 = vpow.pop %v1684
        %v1686 = vmul.f32 %v1681, 1.442695
        %v1687 = vpow.pop %v1686
        %v1688 = vmul.f32 %v1682, 1.442695
        %v1689 = vpow.pop %v1688
        %v1690 = vmul.f32 %v1683, 1.442695
        %v1691 = vpow.pop %v1690
        %v1692 = vadd.f32 %v1685, 1.0
        %v1693 = vadd.f32 %v1687, 1.0
        %v1694 = vadd.f32 %v1689, 1.0
        %v1695 = vadd.f32 %v1691, 1.0
        %v1696 = vrcp.pop %v1692
        %v1697 = vrcp.pop %v1693
        %v1698 = vrcp.pop %v1694
        %v1699 = vrcp.pop %v1695
        %1701 = vset.pattern.permute.xlu0 0
        %1702 = vperm.xlu0 %1701, %v1696
        %v1703 = vpop.permute.xlu0 %1702
        %1706 = vset.pattern.permute.xlu0 0
        %1707 = vperm.xlu0 %1706, %v1697
        %v1708 = vpop.permute.xlu0 %1707
        %1711 = vset.pattern.permute.xlu0 0
        %1712 = vperm.xlu0 %1711, %v1698
        %v1713 = vpop.permute.xlu0 %1712
        %1716 = vset.pattern.permute.xlu0 0
        %1717 = vperm.xlu0 %1716, %v1699
        %v1718 = vpop.permute.xlu0 %1717
        %v1720 = vmul.f32 %v1582, %v1703
        %v1721 = vmul.f32 %v1583, %v1703
        %v1722 = vmul.f32 %v1586, %v1708
        %v1723 = vmul.f32 %v1587, %v1708
        %v1724 = vmul.f32 %v1590, %v1713
        %v1725 = vmul.f32 %v1591, %v1713
        %v1726 = vmul.f32 %v1594, %v1718
        %v1727 = vmul.f32 %v1595, %v1718
        %v1728 = vadd.f32 %v1584, %v1585
        %1729 = vadd.xlane.f32.xlu0 %v1728
        %v1730 = vpop.xlane.xlu0 %1729
        %v1731 = vadd.f32 %v1588, %v1589
        %1732 = vadd.xlane.f32.xlu0 %v1731
        %v1733 = vpop.xlane.xlu0 %1732
        %v1734 = vadd.f32 %v1592, %v1593
        %1735 = vadd.xlane.f32.xlu0 %v1734
        %v1736 = vpop.xlane.xlu0 %1735
        %v1737 = vadd.f32 %v1596, %v1597
        %1738 = vadd.xlane.f32.xlu0 %v1737
        %v1739 = vpop.xlane.xlu0 %1738
        %v1740 = vmul.f32 %v1730, %v1616
        %v1741 = vmul.f32 %v1733, %v1616
        %v1742 = vmul.f32 %v1736, %v1616
        %v1743 = vmul.f32 %v1739, %v1616
        %v1744 = vmul.f32 %v1621, %v1740
        %v1745 = vmul.f32 %v1622, %v1741
        %v1746 = vmul.f32 %v1623, %v1742
        %v1747 = vmul.f32 %v1624, %v1743
        %v1748 = vsel %vm1629, %v1744, 0.0
        %v1749 = vsel %vm1629, %v1745, 0.0
        %v1750 = vadd.f32 %v1748, %v1749
        %v1751 = vsel %vm1629, %v1746, 0.0
        %v1752 = vadd.f32 %v1750, %v1751
        %v1753 = vsel %vm1629, %v1747, 0.0
        %v1754 = vadd.f32 %v1752, %v1753
        %v1755 = vrot.slane %v1754, 4
        %v1756 = vadd.f32 %v1754, %v1755
        %v1757 = vrot.slane %v1756, 2
        %v1758 = vadd.f32 %v1756, %v1757
        %v1759 = vrot.slane %v1758, 1
        %v1760 = vadd.f32 %v1758, %v1759
        %v1761 = vadd.f32 %v1760, %v1643
        %v1762 = vsub.f32 0.0, %v1761
        %v1763 = vmul.f32 %v1762, 1.442695
        %v1764 = vpow.pop %v1763
        %v1765 = vadd.f32 %v1764, 1.0
        %v1766 = vrcp.pop %v1765
        %v1767 = vmul.f32 %v1761, %v1766
        %v1768 = vperm.slane %v1767, 0
        %v1769 = vmul.f32 %v1651, %v1768
        %v1770 = vmul.f32 %v1652, %v1768
        %v1771 = vmul.f32 %v1653, %v1768
        %v1772 = vmul.f32 %v1654, %v1768
        %v1773 = vsel %vm1629, %v1769, 0.0
        %1774 = vadd.xlane.f32.xlu0 %v1773
        %v1775 = vpop.xlane.xlu0 %1774
        %v1776 = vsel %vm1629, %v1770, 0.0
        %1777 = vadd.xlane.f32.xlu0 %v1776
        %v1778 = vpop.xlane.xlu0 %1777
        %v1779 = vsel %vm1629, %v1771, 0.0
        %1780 = vadd.xlane.f32.xlu0 %v1779
        %v1781 = vpop.xlane.xlu0 %1780
        %v1782 = vsel %vm1629, %v1772, 0.0
        %1783 = vadd.xlane.f32.xlu0 %v1782
        %v1784 = vpop.xlane.xlu0 %1783
        %v1785 = vadd.f32 %v1775, %v1672
        %v1786 = vadd.f32 %v1778, %v1673
        %v1787 = vadd.f32 %v1781, %v1674
        %v1788 = vadd.f32 %v1784, %v1675
        %v1789 = vsub.f32 0.0, %v1785
        %v1790 = vsub.f32 0.0, %v1786
        %v1791 = vsub.f32 0.0, %v1787
        %v1792 = vsub.f32 0.0, %v1788
        %v1793 = vmul.f32 %v1789, 1.442695
        %v1794 = vpow.pop %v1793
        %v1795 = vmul.f32 %v1790, 1.442695
        %v1796 = vpow.pop %v1795
        %v1797 = vmul.f32 %v1791, 1.442695
        %v1798 = vpow.pop %v1797
        %v1799 = vmul.f32 %v1792, 1.442695
        %v1800 = vpow.pop %v1799
        %v1801 = vadd.f32 %v1794, 1.0
        %v1802 = vadd.f32 %v1796, 1.0
        %v1803 = vadd.f32 %v1798, 1.0
        %v1804 = vadd.f32 %v1800, 1.0
        %v1805 = vrcp.pop %v1801
        %v1806 = vrcp.pop %v1802
        %v1807 = vrcp.pop %v1803
        %v1808 = vrcp.pop %v1804
        %1810 = vset.pattern.permute.xlu0 0
        %1811 = vperm.xlu0 %1810, %v1805
        %v1812 = vpop.permute.xlu0 %1811
        %1815 = vset.pattern.permute.xlu0 0
        %1816 = vperm.xlu0 %1815, %v1806
        %v1817 = vpop.permute.xlu0 %1816
        %1820 = vset.pattern.permute.xlu0 0
        %1821 = vperm.xlu0 %1820, %v1807
        %v1822 = vpop.permute.xlu0 %1821
        %1825 = vset.pattern.permute.xlu0 0
        %1826 = vperm.xlu0 %1825, %v1808
        %v1827 = vpop.permute.xlu0 %1826
        %v1829 = vmul.f32 %v1584, %v1812
        %v1830 = vmul.f32 %v1585, %v1812
        %v1831 = vmul.f32 %v1588, %v1817
        %v1832 = vmul.f32 %v1589, %v1817
        %v1833 = vmul.f32 %v1592, %v1822
        %v1834 = vmul.f32 %v1593, %v1822
        %v1835 = vmul.f32 %v1596, %v1827
        %v1836 = vmul.f32 %v1597, %v1827
        %v1837 = vld [vmem:[%s9] sm:$0xf]
        %v1838 = vpack.c.bf16 %v1722, %v1720
        %v1839 = vpack.c.bf16 %v1723, %v1721
        %v1840 = vpack.c.bf16 %v1831, %v1829
        %v1841 = vpack.c.bf16 %v1832, %v1830
        %v1842 = vpack.c.bf16 %v1726, %v1724
        %v1843 = vpack.c.bf16 %v1727, %v1725
        %v1844 = vpack.c.bf16 %v1835, %v1833
        %v1845 = vpack.c.bf16 %v1836, %v1834
        %v1846 = vld [vmem:[%s10] sm:$0xff]
        %1848 = vset.pattern.permute.xlu0 0
        %1849 = vperm.xlu0 %1848, %v1846
        %v1850 = vpop.permute.xlu0 %1849
        %vm1852 = vcmask 261120
        %v1854 = vsel %vm1852, %v1837, 0
        %1856 = vmatpush.bf16.msra.mxu0 0
        %1857 = vmatpush.bf16.msra.mxu0 0
        %1858 = vmatpush.bf16.msra.mxu0 0
        %1859 = vmatpush.bf16.msra.mxu0 0
        %1860 = vmatpush.bf16.msra.mxu0 0
        %1861 = vmatpush.bf16.msra.mxu0 0
        %1862 = vmatpush.bf16.msra.mxu0 %v1842
        %1863 = vmatpush.bf16.msra.mxu0 %v1838
        %1864 = vmatmul.bf16.gmra.mxu0 %v1854
        %v1865 = vpop.f32.mrf.mxu0
        %v1866 = vadd.f32 %v1850, %v1865
        %v1867 = vpop.f32.mrf.mxu0
        %1868 = vdwg.mxu0
        %1869 = vmatpush.bf16.msra.mxu0 0
        %1870 = vmatpush.bf16.msra.mxu0 0
        %1871 = vmatpush.bf16.msra.mxu0 0
        %1872 = vmatpush.bf16.msra.mxu0 0
        %1873 = vmatpush.bf16.msra.mxu0 0
        %1874 = vmatpush.bf16.msra.mxu0 0
        %1875 = vmatpush.bf16.msra.mxu0 %v1843
        %1876 = vmatpush.bf16.msra.mxu0 %v1839
        %1877 = vmatmul.bf16.gmra.mxu0 %v1854
        %v1878 = vpop.f32.mrf.mxu0
        %v1879 = vadd.f32 %v1850, %v1878
        %v1880 = vpop.f32.mrf.mxu0
        %1881 = vdwg.mxu0
        %1882 = vmatpush.bf16.msra.mxu0 0
        %1883 = vmatpush.bf16.msra.mxu0 0
        %1884 = vmatpush.bf16.msra.mxu0 0
        %1885 = vmatpush.bf16.msra.mxu0 0
        %1886 = vmatpush.bf16.msra.mxu0 0
        %1887 = vmatpush.bf16.msra.mxu0 0
        %1888 = vmatpush.bf16.msra.mxu0 %v1844
        %1889 = vmatpush.bf16.msra.mxu0 %v1840
        %1890 = vmatmul.bf16.gmra.mxu0 %v1854
        %v1891 = vpop.f32.mrf.mxu0
        %v1892 = vadd.f32 %v1850, %v1891
        %v1893 = vpop.f32.mrf.mxu0
        %1894 = vdwg.mxu0
        %1895 = vmatpush.bf16.msra.mxu0 0
        %1896 = vmatpush.bf16.msra.mxu0 0
        %1897 = vmatpush.bf16.msra.mxu0 0
        %1898 = vmatpush.bf16.msra.mxu0 0
        %1899 = vmatpush.bf16.msra.mxu0 0
        %1900 = vmatpush.bf16.msra.mxu0 0
        %1901 = vmatpush.bf16.msra.mxu0 %v1845
        %1902 = vmatpush.bf16.msra.mxu0 %v1841
        %1903 = vmatmul.bf16.gmra.mxu0 %v1854
        %v1904 = vpop.f32.mrf.mxu0
        %v1905 = vadd.f32 %v1850, %v1904
        %v1906 = vpop.f32.mrf.mxu0
        %1907 = vdwg.mxu0
        %v1908 = vadd.f32 %v1866, %v406
        %v1909 = vadd.f32 %v1879, %v407
        %v1910 = vadd.f32 %v1892, %v408
        %v1911 = vadd.f32 %v1905, %v409
        %1912 = vst [vmem:[%s397] sm:$0xff] %v1908
        %1913 = vst [vmem:[%s397 + $0x8] sm:$0xff] %v1909
        %1914 = vst [vmem:[%s397 + $0x10] sm:$0xff] %v1910
        %1915 = vst [vmem:[%s397 + $0x18] sm:$0xff] %v1911
        %s1916 = sand.u32 %s270, 1
        %s1917 = scalar_lea.sflag [#allocation4], %s1916
        %s1918 = sand.u32 %s270, 1
        %s1919 = smul.addr %s1918, 32
        %s1920 = scalar_lea.vmem [#allocation5], %s1919
        // Predicated region
        $region69: #{tpu_custom_call.1} parent=63 // pred_check
          %p1921 = pneg %p280
        $region70: #{tpu_custom_call.1} parent=63 // pred_check_branch
          %1923 = sbr.rel (%p1921) target = $region72
        $region71: #{tpu_custom_call.1} parent=63 // pred_region
          %s1924 = smul.u32 4, %s26
          %1926 = vsyncadd %s1917, 0
          %s1927 = smul.addr %s1924, 8
          %s1928 = scalar_lea.hbm %s11, %s1927
          %s1930 = sshll.u32 %s1920, 4
          %s1931 = int_to_ptr.vmem [resolvable:$true] %s1930
          %s1932 = sshll.u32 %s1928, 4
          %s1933 = int_to_ptr.hbm [resolvable:$true] %s1932
          %1935 = dma.vmem_to_hbm [thread:$0]  %s1931, 512, %s1933, %s1917
        $region72: #{tpu_custom_call.1} parent=63 // pred_fallthru
          _
      $region64: #{tpu_custom_call.1} parent=5 // pred_fallthru
        _
      %p1936 = scmp.le.s32.totalorder 2, %s21
      // Predicated region
      $region73: #{tpu_custom_call.1} parent=5 // pred_check
        %p1937 = pneg %p1936
      $region74: #{tpu_custom_call.1} parent=5 // pred_check_branch
        %1939 = sbr.rel (%p1937) target = $region76
      $region75: #{tpu_custom_call.1} parent=5 // pred_region
        %s1940 = ssub.s32 %s21, 2
        // Predicated region
        $region77: #{tpu_custom_call.1} parent=75 // pred_check
          %p1941 = pneg %p286
        $region78: #{tpu_custom_call.1} parent=75 // pred_check_branch
          %1943 = sbr.rel (%p1941) target = $region80
        $region79: #{tpu_custom_call.1} parent=75 // pred_region
          %s1944 = sand.u32 %s271, 1
          %s1945 = scalar_lea.sflag [#allocation4], %s1944
          %s1946 = sand.u32 %s271, 1
          %s1947 = smul.addr %s1946, 32
          %s1948 = scalar_lea.vmem [#allocation5], %s1947
          %1950 = dma.done %s1945, 512
        $region80: #{tpu_custom_call.1} parent=75 // pred_fallthru
          _
      $region76: #{tpu_custom_call.1} parent=5 // pred_fallthru
        _
    $region6: #{tpu_custom_call.1} parent=1 // loop_footer
      %s25 = sadd.s32 1, %s21
    $region7: #{tpu_custom_call.1} parent=1 // loop_footer_branch
      %20 = sbr.rel target = $region3
    $region8: #{tpu_custom_call.1} parent=1 // loop_exit
      _
    %1951 = vsyncpa [#allocation3], 1
    %s1952 = scalar_lea.sflag [#allocation3], 1
    %1953 = vsyncpa %s1952, 1
    %1954 = vsyncpa [#allocation4], 1
    %s1955 = scalar_lea.sflag [#allocation4], 1
    %1956 = vsyncpa %s1955, 1

</llo_original>
